<compile_context>
chip_gen: v7x
topology: tpu7x:2x2x1
jax: 0.10.0
libtpu: 0.0.40
codegen_flags: <defaults>
</compile_context>

<pallas_src>
import math

import jax
import jax.numpy as jnp
import numpy as np
from jax.experimental import pallas as pl
from jax.experimental.pallas import tpu as pltpu


# ----------------------------------------------------------------------------
# Fused kernel: GCN stack + gated aggregation + dense stack + output linear
# ----------------------------------------------------------------------------
def _make_fused_kernel(n_edge, n_gcn, n_dense):
    """Builds the fused forward kernel.

    Ref order:
      node_flat (B*N, m_dim)
      adj_bd    (B*N, E*B*N)   block-diagonal, e-major adjacency (channel 0 dropped)
      summat    (B, B*N)       0/1 per-graph node-summation matrix
      per GCN layer: (E+1, Cin+1, Cout)  -- rows 0..Cin-1 = weight, row Cin = bias;
                                            blocks 0..E-1 = edge-type linears, block E = self/skip
      wij_aug   (gc_last + m_dim + 1, 2*aux)  -- [Wi|Wj] rows split by input block, bias last row
      per dense layer: (Cin+1, Cout)          -- weight rows + bias row
      wo_aug    (last_dim + 1, 1)
      outputs: out (B, 1), h (B, last_dim)
    """

    def kernel(*refs):
        it = iter(refs)
        node_ref = next(it)
        adj_ref = next(it)
        summat_ref = next(it)
        gcn_refs = [next(it) for _ in range(n_gcn)]
        wij_ref = next(it)
        dense_refs = [next(it) for _ in range(n_dense)]
        wo_ref = next(it)
        out_ref = next(it)
        h_ref = next(it)

        node = node_ref[...]                      # (B*N, m_dim) f32
        adj_bd = adj_ref[...]                     # (B*N, E*B*N) f32
        h = node

        # ---- relational GCN stack -------------------------------------------
        # out = tanh( sum_e A_e @ (h @ W_e + b_e) + h @ W_self + b_self )
        # E per-edge dots (<=128-lane outputs), sublane concat (tile-aligned),
        # then ONE block-diagonal adjacency contraction for the whole batch.
        for w_ref in gcn_refs:
            cin = w_ref.shape[1] - 1
            parts = []
            skip = None
            for e_i in range(n_edge + 1):
                blk = w_ref[e_i]                                   # (Cin+1, Cout)
                y = (jnp.dot(h, blk[:cin, :],
                             preferred_element_type=jnp.float32)
                     + blk[cin:cin + 1, :])
                if e_i < n_edge:
                    parts.append(y)                                # (B*N, Cout)
                else:
                    skip = y                                       # self/skip term
            h_stack = jnp.concatenate(parts, axis=0)               # (E*B*N, Cout)
            h = jnp.tanh(
                jnp.dot(adj_bd, h_stack, preferred_element_type=jnp.float32)
                + skip)                                            # (B*N, Cout)

        # ---- gated graph aggregation ----------------------------------------
        # ann = concat([h, node], -1) is done implicitly by splitting the
        # aggregation weight rows by input block (no in-kernel concat).
        gc_last = h.shape[1]
        m_dim = node.shape[1]
        aux = wij_ref.shape[1] // 2
        g = (jnp.dot(h, wij_ref[:gc_last, :],
                     preferred_element_type=jnp.float32)
             + jnp.dot(node, wij_ref[gc_last:gc_last + m_dim, :],
                       preferred_element_type=jnp.float32)
             + wij_ref[gc_last + m_dim:gc_last + m_dim + 1, :])    # (B*N, 2*aux)
        prod = jax.nn.sigmoid(g[:, :aux]) * jnp.tanh(g[:, aux:])   # (B*N, aux)

        # Per-graph sum over nodes via the (precomputed) 0/1 summation matrix
        # on the otherwise idle MXU instead of a cross-sublane XLU reduction.
        x = jnp.tanh(jnp.dot(summat_ref[...], prod,
                             preferred_element_type=jnp.float32))  # (B, aux)

        # ---- dense stack (Dropout = identity in eval) + output linear -------
        for d_ref in dense_refs:
            cin = d_ref.shape[0] - 1
            x = jnp.tanh(
                jnp.dot(x, d_ref[:cin, :], preferred_element_type=jnp.float32)
                + d_ref[cin:cin + 1, :])
        h_ref[...] = x                                             # (B, last_dim)
        cin = wo_ref.shape[0] - 1
        out_ref[...] = (jnp.dot(x, wo_ref[:cin, :],
                                preferred_element_type=jnp.float32)
                        + wo_ref[cin:cin + 1, :])                  # (B, 1)

    return kernel


def _full_spec(shape):
    nd = len(shape)
    return pl.BlockSpec(tuple(shape), lambda i, _nd=nd: (0,) * _nd)


# ----------------------------------------------------------------------------
# Forward wrapper (single fused pallas_call)
# ----------------------------------------------------------------------------
def discriminator_forward(packed, adj, hidden, node, activation=None):
    """adj: (B, N, N, Y) bond tensor, node: (B, N, m_dim), hidden: None only."""
    if hidden is not None:
        # TODO(synk): hidden-tensor / with_features concat path not implemented.
        raise NotImplementedError("hidden-tensor path not implemented")

    b, n, m_dim = node.shape
    y = adj.shape[-1]
    e = y - 1                                        # drop the "no bond" channel
    n_gcn = len(packed["gcn"])
    n_dense = len(packed["dense"])
    last_dim = (int(packed["dense"][-1].shape[-1]) if n_dense
                else int(packed["wij"].shape[-1]) // 2)

    # Layout-only glue, kept fusible into the kernel's input DMA:
    #   block-diagonal e-major adjacency  adj_bd[b*N+i, e*B*N + c*N + j]
    #     = adj[b, i, j, e+1] * (b == c)
    adj_perm = jnp.transpose(adj[:, :, :, 1:], (0, 1, 3, 2)).astype(jnp.float32)  # (B,N,E,N)
    eye_b = jnp.eye(b, dtype=jnp.float32)
    adj_bd = (adj_perm[:, :, :, None, :]
              * eye_b[:, None, None, :, None]).reshape(b * n, e * b * n)
    node_flat = node.reshape(b * n, m_dim).astype(jnp.float32)
    # Precomputed 0/1 per-graph summation matrix (constant).
    summat = jnp.asarray(np.kron(np.eye(b), np.ones((1, n))), dtype=jnp.float32)

    args = ([node_flat, adj_bd, summat]
            + list(packed["gcn"])
            + [packed["wij"]]
            + list(packed["dense"])
            + [packed["wo"]])

    in_specs = [_full_spec(a.shape) for a in args]
    out_shape = (
        jax.ShapeDtypeStruct((b, 1), jnp.float32),         # logit
        jax.ShapeDtypeStruct((b, last_dim), jnp.float32),  # hidden h
    )
    out_specs = (_full_spec((b, 1)), _full_spec((b, last_dim)))

    # Allow XLA to fuse the (tiny) relayout producers into the kernel's input
    # DMA for the data operands; weight slabs are plain arrays.
    allow_fusion = [True, True, True] + [False] * (len(args) - 3)

    kernel = _make_fused_kernel(e, n_gcn, n_dense)
    out, h = pl.pallas_call(
        kernel,
        out_shape=out_shape,
        grid=(1,),
        in_specs=in_specs,
        out_specs=out_specs,
        compiler_params=pltpu.CompilerParams(
            dimension_semantics=("arbitrary",),
            allow_input_fusion=allow_fusion),
    )(*args)

    if activation is not None:
        out = activation(out)
    return out, h


# ----------------------------------------------------------------------------
# Parameter init (PyTorch nn.Linear-style uniform), packing, and reference
# ----------------------------------------------------------------------------
def _linear_init(key, fan_in, fan_out):
    k1, k2 = jax.random.split(key)
    bound = 1.0 / math.sqrt(fan_in)
    w = jax.random.uniform(k1, (fan_in, fan_out), jnp.float32, -bound, bound)
    b = jax.random.uniform(k2, (1, fan_out), jnp.float32, -bound, bound)
    return w, b


def init_params(key, m_dim, edge_types, graph_conv_dim, aux_dim, linear_dim):
    params = {"gcn": [], "agg": {}, "mlp": {"dense": []}}
    dims = [m_dim] + list(graph_conv_dim)
    for c_in, c_out in zip(dims[:-1], dims[1:]):
        ws, bs = [], []
        for _ in range(edge_types):
            key, sub = jax.random.split(key)
            w, b = _linear_init(sub, c_in, c_out)
            ws.append(w)
            bs.append(b[0])
        key, sub = jax.random.split(key)
        w2, b2 = _linear_init(sub, c_in, c_out)
        params["gcn"].append(
            {"we": jnp.stack(ws), "be": jnp.stack(bs), "w2": w2, "b2": b2})
    agg_in = graph_conv_dim[-1] + m_dim
    key, k_i, k_j = jax.random.split(key, 3)
    params["agg"]["wi"], params["agg"]["bi"] = _linear_init(k_i, agg_in, aux_dim)
    params["agg"]["wj"], params["agg"]["bj"] = _linear_init(k_j, agg_in, aux_dim)
    d = [aux_dim] + list(linear_dim)
    for c_in, c_out in zip(d[:-1], d[1:]):
        key, sub = jax.random.split(key)
        params["mlp"]["dense"].append(_linear_init(sub, c_in, c_out))
    key, sub = jax.random.split(key)
    params["mlp"]["wo"], params["mlp"]["bo"] = _linear_init(sub, linear_dim[-1], 1)
    return params


def pack_params(params):
    """One-time repack of the per-layer weights into the fused-kernel layout.

    Bias rows are appended below their weight matrices (all sublane offsets
    remain multiples of 8); each GCN layer's E+1 blocks are stacked into one
    (E+1, Cin+1, Cout) array (edge-type linears first, self/skip last).
    """
    packed = {"gcn": [], "dense": []}
    for p in params["gcn"]:
        we, be, w2, b2 = p["we"], p["be"], p["w2"], p["b2"]
        e = we.shape[0]
        blocks = [jnp.concatenate([we[i], be[i][None, :]], axis=0) for i in range(e)]
        blocks.append(jnp.concatenate([w2, b2], axis=0))
        packed["gcn"].append(jnp.stack(blocks, axis=0))          # (E+1, Cin+1, Cout)
    wi, bi = params["agg"]["wi"], params["agg"]["bi"]
    wj, bj = params["agg"]["wj"], params["agg"]["bj"]
    w_ij = jnp.concatenate([wi, wj], axis=1)                     # (gc_last+m_dim, 2*aux)
    b_ij = jnp.concatenate([bi, bj], axis=1)                     # (1, 2*aux)
    packed["wij"] = jnp.concatenate([w_ij, b_ij], axis=0)        # (gc_last+m_dim+1, 2*aux)
    packed["dense"] = [jnp.concatenate([w, bb], axis=0)
                       for (w, bb) in params["mlp"]["dense"]]    # (Cin+1, Cout)
    packed["wo"] = jnp.concatenate(
        [params["mlp"]["wo"], params["mlp"]["bo"]], axis=0)      # (last_dim+1, 1)
    return packed


def reference_forward(params, adj, node):
    """Pure-JAX reference mirroring the PyTorch forward (eval mode)."""
    adj_e = jnp.transpose(adj[:, :, :, 1:], (0, 3, 1, 2))
    h = node
    for p in params["gcn"]:
        hs = jnp.einsum("bnc,ecd->bend", h, p["we"]) + p["be"][None, :, None, :]
        hs = jnp.einsum("benm,bemd->bend", adj_e, hs)
        h = jnp.tanh(hs.sum(1) + jnp.einsum("bnc,cd->bnd", h, p["w2"]) + p["b2"][None])
    ann = jnp.concatenate([h, node], -1)
    pa = params["agg"]
    gate = jax.nn.sigmoid(jnp.einsum("bnf,fa->bna", ann, pa["wi"]) + pa["bi"][None])
    feat = jnp.tanh(jnp.einsum("bnf,fa->bna", ann, pa["wj"]) + pa["bj"][None])
    x = jnp.tanh(jnp.sum(gate * feat, axis=1))
    pm = params["mlp"]
    for w, b in pm["dense"]:
        x = jnp.tanh(x @ w + b)
    return x @ pm["wo"] + pm["bo"], x


# ----------------------------------------------------------------------------
if __name__ == "__main__":
    # Small MolGAN-like shapes.
    B, N = 2, 16           # batch, nodes
    m_dim = 8              # atom-type features
    b_dim = 4              # bond types (channel 0 = "no bond", dropped)
    edge_types = b_dim - 1
    conv_dim = ([32, 64], 128, [128, 64])   # (graph_conv_dim, aux_dim, linear_dim)
    graph_conv_dim, aux_dim, linear_dim = conv_dim

    key = jax.random.PRNGKey(0)
    k_adj, k_node, k_params = jax.random.split(key, 3)
    adj = jax.random.uniform(k_adj, (B, N, N, b_dim), jnp.float32)
    node = jax.random.uniform(k_node, (B, N, m_dim), jnp.float32)
    params = init_params(k_params, m_dim, edge_types, graph_conv_dim, aux_dim, linear_dim)
    packed = pack_params(params)

    fwd = jax.jit(lambda pk, a, nd: discriminator_forward(pk, a, None, nd))
    out, h = fwd(packed, adj, node)
    out, h = jax.block_until_ready((out, h))

    ref_out, ref_h = reference_forward(params, adj, node)
    np.testing.assert_allclose(np.asarray(out), np.asarray(ref_out), rtol=5e-3, atol=5e-3)
    np.testing.assert_allclose(np.asarray(h), np.asarray(ref_h), rtol=5e-3, atol=5e-3)

    print("KERNEL_OK")
</pallas_src>

<mosaic_0001>
module attributes {stable_mosaic.version = 11 : i64} {
  func.func @kernel(%arg0: i32, %arg1: memref<32x8xf32, #tpu.memory_space<vmem>>, %arg2: memref<32x96xf32, #tpu.memory_space<vmem>>, %arg3: memref<2x32xf32, #tpu.memory_space<vmem>>, %arg4: memref<4x9x32xf32, #tpu.memory_space<vmem>>, %arg5: memref<4x33x64xf32, #tpu.memory_space<vmem>>, %arg6: memref<73x256xf32, #tpu.memory_space<vmem>>, %arg7: memref<129x128xf32, #tpu.memory_space<vmem>>, %arg8: memref<129x64xf32, #tpu.memory_space<vmem>>, %arg9: memref<65x1xf32, #tpu.memory_space<vmem>>, %arg10: memref<2x1xf32, #tpu.memory_space<vmem>>, %arg11: memref<2x64xf32, #tpu.memory_space<vmem>>) attributes {dimension_semantics = [#tpu.dimension_semantics<arbitrary>], iteration_bounds = array<i64: 1>, scalar_prefetch = 0 : i64, scratch_operands = 0 : i64, tpu.core_type = #tpu.core_type<tc>, window_params = [{pipeline_mode = #tpu.pipeline_mode<synchronous>, transform_indices = @transform_0, window_bounds = array<i64: 32, 8>}, {pipeline_mode = #tpu.pipeline_mode<synchronous>, transform_indices = @transform_1, window_bounds = array<i64: 32, 96>}, {pipeline_mode = #tpu.pipeline_mode<synchronous>, transform_indices = @transform_2, window_bounds = array<i64: 2, 32>}, {pipeline_mode = #tpu.pipeline_mode<synchronous>, transform_indices = @transform_3, window_bounds = array<i64: 4, 9, 32>}, {pipeline_mode = #tpu.pipeline_mode<synchronous>, transform_indices = @transform_4, window_bounds = array<i64: 4, 33, 64>}, {pipeline_mode = #tpu.pipeline_mode<synchronous>, transform_indices = @transform_5, window_bounds = array<i64: 73, 256>}, {pipeline_mode = #tpu.pipeline_mode<synchronous>, transform_indices = @transform_6, window_bounds = array<i64: 129, 128>}, {pipeline_mode = #tpu.pipeline_mode<synchronous>, transform_indices = @transform_7, window_bounds = array<i64: 129, 64>}, {pipeline_mode = #tpu.pipeline_mode<synchronous>, transform_indices = @transform_8, window_bounds = array<i64: 65, 1>}, {pipeline_mode = #tpu.pipeline_mode<synchronous>, transform_indices = @transform_9, window_bounds = array<i64: 2, 1>}, {pipeline_mode = #tpu.pipeline_mode<synchronous>, transform_indices = @transform_10, window_bounds = array<i64: 2, 64>}]} {
    %c0 = arith.constant 0 : index
    %c0_0 = arith.constant 0 : index
    %0 = vector.load %arg1[%c0, %c0_0] : memref<32x8xf32, #tpu.memory_space<vmem>>, vector<32x8xf32>
    %c0_1 = arith.constant 0 : index
    %c0_2 = arith.constant 0 : index
    %1 = vector.load %arg2[%c0_1, %c0_2] : memref<32x96xf32, #tpu.memory_space<vmem>>, vector<32x96xf32>
    %c0_3 = arith.constant 0 : index
    %c0_4 = arith.constant 0 : index
    %c0_5 = arith.constant 0 : index
    %2 = vector.load %arg4[%c0_3, %c0_4, %c0_5] : memref<4x9x32xf32, #tpu.memory_space<vmem>>, vector<1x9x32xf32>
    %3 = vector.shape_cast %2 : vector<1x9x32xf32> to vector<9x32xf32>
    %4 = vector.extract_strided_slice %3 {offsets = [0, 0], sizes = [8, 32], strides = [1, 1]} : vector<9x32xf32> to vector<8x32xf32>
    %cst = arith.constant dense<0.000000e+00> : vector<32x32xf32>
    %5 = tpu.matmul %0, %4, %cst {dimension_numbers = #tpu.dot_dimension_numbers<[1], [0], [0], [1], [0, 0, 1, 1], [], []>} : vector<32x8xf32>, vector<8x32xf32>, vector<32x32xf32> -> vector<32x32xf32>
    %6 = vector.extract_strided_slice %3 {offsets = [8, 0], sizes = [1, 32], strides = [1, 1]} : vector<9x32xf32> to vector<1x32xf32>
    %7 = vector.broadcast %6 : vector<1x32xf32> to vector<32x32xf32>
    %8 = arith.addf %5, %7 : vector<32x32xf32>
    %c1 = arith.constant 1 : index
    %c0_6 = arith.constant 0 : index
    %c0_7 = arith.constant 0 : index
    %9 = vector.load %arg4[%c1, %c0_6, %c0_7] : memref<4x9x32xf32, #tpu.memory_space<vmem>>, vector<1x9x32xf32>
    %10 = vector.shape_cast %9 : vector<1x9x32xf32> to vector<9x32xf32>
    %11 = vector.extract_strided_slice %10 {offsets = [0, 0], sizes = [8, 32], strides = [1, 1]} : vector<9x32xf32> to vector<8x32xf32>
    %cst_8 = arith.constant dense<0.000000e+00> : vector<32x32xf32>
    %12 = tpu.matmul %0, %11, %cst_8 {dimension_numbers = #tpu.dot_dimension_numbers<[1], [0], [0], [1], [0, 0, 1, 1], [], []>} : vector<32x8xf32>, vector<8x32xf32>, vector<32x32xf32> -> vector<32x32xf32>
    %13 = vector.extract_strided_slice %10 {offsets = [8, 0], sizes = [1, 32], strides = [1, 1]} : vector<9x32xf32> to vector<1x32xf32>
    %14 = vector.broadcast %13 : vector<1x32xf32> to vector<32x32xf32>
    %15 = arith.addf %12, %14 : vector<32x32xf32>
    %c2 = arith.constant 2 : index
    %c0_9 = arith.constant 0 : index
    %c0_10 = arith.constant 0 : index
    %16 = vector.load %arg4[%c2, %c0_9, %c0_10] : memref<4x9x32xf32, #tpu.memory_space<vmem>>, vector<1x9x32xf32>
    %17 = vector.shape_cast %16 : vector<1x9x32xf32> to vector<9x32xf32>
    %18 = vector.extract_strided_slice %17 {offsets = [0, 0], sizes = [8, 32], strides = [1, 1]} : vector<9x32xf32> to vector<8x32xf32>
    %cst_11 = arith.constant dense<0.000000e+00> : vector<32x32xf32>
    %19 = tpu.matmul %0, %18, %cst_11 {dimension_numbers = #tpu.dot_dimension_numbers<[1], [0], [0], [1], [0, 0, 1, 1], [], []>} : vector<32x8xf32>, vector<8x32xf32>, vector<32x32xf32> -> vector<32x32xf32>
    %20 = vector.extract_strided_slice %17 {offsets = [8, 0], sizes = [1, 32], strides = [1, 1]} : vector<9x32xf32> to vector<1x32xf32>
    %21 = vector.broadcast %20 : vector<1x32xf32> to vector<32x32xf32>
    %22 = arith.addf %19, %21 : vector<32x32xf32>
    %c3 = arith.constant 3 : index
    %c0_12 = arith.constant 0 : index
    %c0_13 = arith.constant 0 : index
    %23 = vector.load %arg4[%c3, %c0_12, %c0_13] : memref<4x9x32xf32, #tpu.memory_space<vmem>>, vector<1x9x32xf32>
    %24 = vector.shape_cast %23 : vector<1x9x32xf32> to vector<9x32xf32>
    %25 = vector.extract_strided_slice %24 {offsets = [0, 0], sizes = [8, 32], strides = [1, 1]} : vector<9x32xf32> to vector<8x32xf32>
    %cst_14 = arith.constant dense<0.000000e+00> : vector<32x32xf32>
    %26 = tpu.matmul %0, %25, %cst_14 {dimension_numbers = #tpu.dot_dimension_numbers<[1], [0], [0], [1], [0, 0, 1, 1], [], []>} : vector<32x8xf32>, vector<8x32xf32>, vector<32x32xf32> -> vector<32x32xf32>
    %27 = vector.extract_strided_slice %24 {offsets = [8, 0], sizes = [1, 32], strides = [1, 1]} : vector<9x32xf32> to vector<1x32xf32>
    %28 = vector.broadcast %27 : vector<1x32xf32> to vector<32x32xf32>
    %29 = arith.addf %26, %28 : vector<32x32xf32>
    %30 = tpu.concatenate %8, %15, %22 in 0 : vector<32x32xf32>, vector<32x32xf32>, vector<32x32xf32> -> vector<96x32xf32>
    %cst_15 = arith.constant dense<0.000000e+00> : vector<32x32xf32>
    %31 = tpu.matmul %1, %30, %cst_15 {dimension_numbers = #tpu.dot_dimension_numbers<[1], [0], [0], [1], [0, 0, 1, 1], [], []>} : vector<32x96xf32>, vector<96x32xf32>, vector<32x32xf32> -> vector<32x32xf32>
    %32 = arith.addf %31, %29 : vector<32x32xf32>
    %33 = math.tanh %32 : vector<32x32xf32>
    %c0_16 = arith.constant 0 : index
    %c0_17 = arith.constant 0 : index
    %c0_18 = arith.constant 0 : index
    %34 = vector.load %arg5[%c0_16, %c0_17, %c0_18] : memref<4x33x64xf32, #tpu.memory_space<vmem>>, vector<1x33x64xf32>
    %35 = vector.shape_cast %34 : vector<1x33x64xf32> to vector<33x64xf32>
    %36 = vector.extract_strided_slice %35 {offsets = [0, 0], sizes = [32, 64], strides = [1, 1]} : vector<33x64xf32> to vector<32x64xf32>
    %cst_19 = arith.constant dense<0.000000e+00> : vector<32x64xf32>
    %37 = tpu.matmul %33, %36, %cst_19 {dimension_numbers = #tpu.dot_dimension_numbers<[1], [0], [0], [1], [0, 0, 1, 1], [], []>} : vector<32x32xf32>, vector<32x64xf32>, vector<32x64xf32> -> vector<32x64xf32>
    %38 = vector.extract_strided_slice %35 {offsets = [32, 0], sizes = [1, 64], strides = [1, 1]} : vector<33x64xf32> to vector<1x64xf32>
    %39 = vector.broadcast %38 : vector<1x64xf32> to vector<32x64xf32>
    %40 = arith.addf %37, %39 : vector<32x64xf32>
    %c1_20 = arith.constant 1 : index
    %c0_21 = arith.constant 0 : index
    %c0_22 = arith.constant 0 : index
    %41 = vector.load %arg5[%c1_20, %c0_21, %c0_22] : memref<4x33x64xf32, #tpu.memory_space<vmem>>, vector<1x33x64xf32>
    %42 = vector.shape_cast %41 : vector<1x33x64xf32> to vector<33x64xf32>
    %43 = vector.extract_strided_slice %42 {offsets = [0, 0], sizes = [32, 64], strides = [1, 1]} : vector<33x64xf32> to vector<32x64xf32>
    %cst_23 = arith.constant dense<0.000000e+00> : vector<32x64xf32>
    %44 = tpu.matmul %33, %43, %cst_23 {dimension_numbers = #tpu.dot_dimension_numbers<[1], [0], [0], [1], [0, 0, 1, 1], [], []>} : vector<32x32xf32>, vector<32x64xf32>, vector<32x64xf32> -> vector<32x64xf32>
    %45 = vector.extract_strided_slice %42 {offsets = [32, 0], sizes = [1, 64], strides = [1, 1]} : vector<33x64xf32> to vector<1x64xf32>
    %46 = vector.broadcast %45 : vector<1x64xf32> to vector<32x64xf32>
    %47 = arith.addf %44, %46 : vector<32x64xf32>
    %c2_24 = arith.constant 2 : index
    %c0_25 = arith.constant 0 : index
    %c0_26 = arith.constant 0 : index
    %48 = vector.load %arg5[%c2_24, %c0_25, %c0_26] : memref<4x33x64xf32, #tpu.memory_space<vmem>>, vector<1x33x64xf32>
    %49 = vector.shape_cast %48 : vector<1x33x64xf32> to vector<33x64xf32>
    %50 = vector.extract_strided_slice %49 {offsets = [0, 0], sizes = [32, 64], strides = [1, 1]} : vector<33x64xf32> to vector<32x64xf32>
    %cst_27 = arith.constant dense<0.000000e+00> : vector<32x64xf32>
    %51 = tpu.matmul %33, %50, %cst_27 {dimension_numbers = #tpu.dot_dimension_numbers<[1], [0], [0], [1], [0, 0, 1, 1], [], []>} : vector<32x32xf32>, vector<32x64xf32>, vector<32x64xf32> -> vector<32x64xf32>
    %52 = vector.extract_strided_slice %49 {offsets = [32, 0], sizes = [1, 64], strides = [1, 1]} : vector<33x64xf32> to vector<1x64xf32>
    %53 = vector.broadcast %52 : vector<1x64xf32> to vector<32x64xf32>
    %54 = arith.addf %51, %53 : vector<32x64xf32>
    %c3_28 = arith.constant 3 : index
    %c0_29 = arith.constant 0 : index
    %c0_30 = arith.constant 0 : index
    %55 = vector.load %arg5[%c3_28, %c0_29, %c0_30] : memref<4x33x64xf32, #tpu.memory_space<vmem>>, vector<1x33x64xf32>
    %56 = vector.shape_cast %55 : vector<1x33x64xf32> to vector<33x64xf32>
    %57 = vector.extract_strided_slice %56 {offsets = [0, 0], sizes = [32, 64], strides = [1, 1]} : vector<33x64xf32> to vector<32x64xf32>
    %cst_31 = arith.constant dense<0.000000e+00> : vector<32x64xf32>
    %58 = tpu.matmul %33, %57, %cst_31 {dimension_numbers = #tpu.dot_dimension_numbers<[1], [0], [0], [1], [0, 0, 1, 1], [], []>} : vector<32x32xf32>, vector<32x64xf32>, vector<32x64xf32> -> vector<32x64xf32>
    %59 = vector.extract_strided_slice %56 {offsets = [32, 0], sizes = [1, 64], strides = [1, 1]} : vector<33x64xf32> to vector<1x64xf32>
    %60 = vector.broadcast %59 : vector<1x64xf32> to vector<32x64xf32>
    %61 = arith.addf %58, %60 : vector<32x64xf32>
    %62 = tpu.concatenate %40, %47, %54 in 0 : vector<32x64xf32>, vector<32x64xf32>, vector<32x64xf32> -> vector<96x64xf32>
    %cst_32 = arith.constant dense<0.000000e+00> : vector<32x64xf32>
    %63 = tpu.matmul %1, %62, %cst_32 {dimension_numbers = #tpu.dot_dimension_numbers<[1], [0], [0], [1], [0, 0, 1, 1], [], []>} : vector<32x96xf32>, vector<96x64xf32>, vector<32x64xf32> -> vector<32x64xf32>
    %64 = arith.addf %63, %61 : vector<32x64xf32>
    %65 = math.tanh %64 : vector<32x64xf32>
    %c0_33 = arith.constant 0 : index
    %c0_34 = arith.constant 0 : index
    %66 = vector.load %arg6[%c0_33, %c0_34] : memref<73x256xf32, #tpu.memory_space<vmem>>, vector<64x256xf32>
    %cst_35 = arith.constant dense<0.000000e+00> : vector<32x256xf32>
    %67 = tpu.matmul %65, %66, %cst_35 {dimension_numbers = #tpu.dot_dimension_numbers<[1], [0], [0], [1], [0, 0, 1, 1], [], []>} : vector<32x64xf32>, vector<64x256xf32>, vector<32x256xf32> -> vector<32x256xf32>
    %c64 = arith.constant 64 : index
    %c0_36 = arith.constant 0 : index
    %68 = vector.load %arg6[%c64, %c0_36] : memref<73x256xf32, #tpu.memory_space<vmem>>, vector<8x256xf32>
    %cst_37 = arith.constant dense<0.000000e+00> : vector<32x256xf32>
    %69 = tpu.matmul %0, %68, %cst_37 {dimension_numbers = #tpu.dot_dimension_numbers<[1], [0], [0], [1], [0, 0, 1, 1], [], []>} : vector<32x8xf32>, vector<8x256xf32>, vector<32x256xf32> -> vector<32x256xf32>
    %70 = arith.addf %67, %69 : vector<32x256xf32>
    %c72 = arith.constant 72 : index
    %c0_38 = arith.constant 0 : index
    %71 = vector.load %arg6[%c72, %c0_38] : memref<73x256xf32, #tpu.memory_space<vmem>>, vector<1x256xf32>
    %72 = vector.broadcast %71 : vector<1x256xf32> to vector<32x256xf32>
    %73 = arith.addf %70, %72 : vector<32x256xf32>
    %74 = vector.extract_strided_slice %73 {offsets = [0, 0], sizes = [32, 128], strides = [1, 1]} : vector<32x256xf32> to vector<32x128xf32>
    %75 = arith.negf %74 : vector<32x128xf32>
    %76 = math.exp %75 : vector<32x128xf32>
    %cst_39 = arith.constant 1.000000e+00 : f32
    %77 = vector.broadcast %cst_39 : f32 to vector<32x128xf32>
    %78 = arith.addf %77, %76 : vector<32x128xf32>
    %79 = arith.divf %77, %78 : vector<32x128xf32>
    %80 = vector.extract_strided_slice %73 {offsets = [0, 128], sizes = [32, 128], strides = [1, 1]} : vector<32x256xf32> to vector<32x128xf32>
    %81 = math.tanh %80 : vector<32x128xf32>
    %82 = arith.mulf %79, %81 : vector<32x128xf32>
    %c0_40 = arith.constant 0 : index
    %c0_41 = arith.constant 0 : index
    %83 = vector.load %arg3[%c0_40, %c0_41] : memref<2x32xf32, #tpu.memory_space<vmem>>, vector<2x32xf32>
    %cst_42 = arith.constant dense<0.000000e+00> : vector<2x128xf32>
    %84 = tpu.matmul %83, %82, %cst_42 {dimension_numbers = #tpu.dot_dimension_numbers<[1], [0], [0], [1], [0, 0, 1, 1], [], []>} : vector<2x32xf32>, vector<32x128xf32>, vector<2x128xf32> -> vector<2x128xf32>
    %85 = math.tanh %84 : vector<2x128xf32>
    %c0_43 = arith.constant 0 : index
    %c0_44 = arith.constant 0 : index
    %86 = vector.load %arg7[%c0_43, %c0_44] : memref<129x128xf32, #tpu.memory_space<vmem>>, vector<128x128xf32>
    %cst_45 = arith.constant dense<0.000000e+00> : vector<2x128xf32>
    %87 = tpu.matmul %85, %86, %cst_45 {dimension_numbers = #tpu.dot_dimension_numbers<[1], [0], [0], [1], [0, 0, 1, 1], [], []>} : vector<2x128xf32>, vector<128x128xf32>, vector<2x128xf32> -> vector<2x128xf32>
    %c128 = arith.constant 128 : index
    %c0_46 = arith.constant 0 : index
    %88 = vector.load %arg7[%c128, %c0_46] : memref<129x128xf32, #tpu.memory_space<vmem>>, vector<1x128xf32>
    %89 = vector.broadcast %88 : vector<1x128xf32> to vector<2x128xf32>
    %90 = arith.addf %87, %89 : vector<2x128xf32>
    %91 = math.tanh %90 : vector<2x128xf32>
    %c0_47 = arith.constant 0 : index
    %c0_48 = arith.constant 0 : index
    %92 = vector.load %arg8[%c0_47, %c0_48] : memref<129x64xf32, #tpu.memory_space<vmem>>, vector<128x64xf32>
    %cst_49 = arith.constant dense<0.000000e+00> : vector<2x64xf32>
    %93 = tpu.matmul %91, %92, %cst_49 {dimension_numbers = #tpu.dot_dimension_numbers<[1], [0], [0], [1], [0, 0, 1, 1], [], []>} : vector<2x128xf32>, vector<128x64xf32>, vector<2x64xf32> -> vector<2x64xf32>
    %c128_50 = arith.constant 128 : index
    %c0_51 = arith.constant 0 : index
    %94 = vector.load %arg8[%c128_50, %c0_51] : memref<129x64xf32, #tpu.memory_space<vmem>>, vector<1x64xf32>
    %95 = vector.broadcast %94 : vector<1x64xf32> to vector<2x64xf32>
    %96 = arith.addf %93, %95 : vector<2x64xf32>
    %97 = math.tanh %96 : vector<2x64xf32>
    %c0_52 = arith.constant 0 : index
    %c0_53 = arith.constant 0 : index
    %98 = vector.load %arg11[%c0_52, %c0_53] : memref<2x64xf32, #tpu.memory_space<vmem>>, vector<2x64xf32>
    tpu.vector_store %arg11[%c0_52, %c0_53], %97 {strides = array<i32>} : memref<2x64xf32, #tpu.memory_space<vmem>>, vector<2x64xf32>,
    %c0_54 = arith.constant 0 : index
    %c0_55 = arith.constant 0 : index
    %99 = vector.load %arg9[%c0_54, %c0_55] : memref<65x1xf32, #tpu.memory_space<vmem>>, vector<64x1xf32>
    %cst_56 = arith.constant dense<0.000000e+00> : vector<2x1xf32>
    %100 = tpu.matmul %97, %99, %cst_56 {dimension_numbers = #tpu.dot_dimension_numbers<[1], [0], [0], [1], [0, 0, 1, 1], [], []>} : vector<2x64xf32>, vector<64x1xf32>, vector<2x1xf32> -> vector<2x1xf32>
    %c64_57 = arith.constant 64 : index
    %c0_58 = arith.constant 0 : index
    %101 = vector.load %arg9[%c64_57, %c0_58] : memref<65x1xf32, #tpu.memory_space<vmem>>, vector<1x1xf32>
    %102 = vector.broadcast %101 : vector<1x1xf32> to vector<2x1xf32>
    %103 = arith.addf %100, %102 : vector<2x1xf32>
    %c0_59 = arith.constant 0 : index
    %c0_60 = arith.constant 0 : index
    %104 = vector.load %arg10[%c0_59, %c0_60] : memref<2x1xf32, #tpu.memory_space<vmem>>, vector<2x1xf32>
    tpu.vector_store %arg10[%c0_59, %c0_60], %103 {strides = array<i32>} : memref<2x1xf32, #tpu.memory_space<vmem>>, vector<2x1xf32>,
    return
  }
  func.func @transform_0(%arg0: i32) -> (i32, i32) {
    %c0_i32 = arith.constant 0 : i32
    %c0_i32_0 = arith.constant 0 : i32
    %c0_i32_1 = arith.constant 0 : i32
    return %c0_i32, %c0_i32_0 : i32, i32
  }
  func.func @transform_1(%arg0: i32) -> (i32, i32) {
    %c0_i32 = arith.constant 0 : i32
    %c0_i32_0 = arith.constant 0 : i32
    %c0_i32_1 = arith.constant 0 : i32
    return %c0_i32, %c0_i32_0 : i32, i32
  }
  func.func @transform_2(%arg0: i32) -> (i32, i32) {
    %c0_i32 = arith.constant 0 : i32
    %c0_i32_0 = arith.constant 0 : i32
    %c0_i32_1 = arith.constant 0 : i32
    return %c0_i32, %c0_i32_0 : i32, i32
  }
  func.func @transform_3(%arg0: i32) -> (i32, i32, i32) {
    %c0_i32 = arith.constant 0 : i32
    %c0_i32_0 = arith.constant 0 : i32
    %c0_i32_1 = arith.constant 0 : i32
    %c0_i32_2 = arith.constant 0 : i32
    return %c0_i32, %c0_i32_0, %c0_i32_1 : i32, i32, i32
  }
  func.func @transform_4(%arg0: i32) -> (i32, i32, i32) {
    %c0_i32 = arith.constant 0 : i32
    %c0_i32_0 = arith.constant 0 : i32
    %c0_i32_1 = arith.constant 0 : i32
    %c0_i32_2 = arith.constant 0 : i32
    return %c0_i32, %c0_i32_0, %c0_i32_1 : i32, i32, i32
  }
  func.func @transform_5(%arg0: i32) -> (i32, i32) {
    %c0_i32 = arith.constant 0 : i32
    %c0_i32_0 = arith.constant 0 : i32
    %c0_i32_1 = arith.constant 0 : i32
    return %c0_i32, %c0_i32_0 : i32, i32
  }
  func.func @transform_6(%arg0: i32) -> (i32, i32) {
    %c0_i32 = arith.constant 0 : i32
    %c0_i32_0 = arith.constant 0 : i32
    %c0_i32_1 = arith.constant 0 : i32
    return %c0_i32, %c0_i32_0 : i32, i32
  }
  func.func @transform_7(%arg0: i32) -> (i32, i32) {
    %c0_i32 = arith.constant 0 : i32
    %c0_i32_0 = arith.constant 0 : i32
    %c0_i32_1 = arith.constant 0 : i32
    return %c0_i32, %c0_i32_0 : i32, i32
  }
  func.func @transform_8(%arg0: i32) -> (i32, i32) {
    %c0_i32 = arith.constant 0 : i32
    %c0_i32_0 = arith.constant 0 : i32
    %c0_i32_1 = arith.constant 0 : i32
    return %c0_i32, %c0_i32_0 : i32, i32
  }
  func.func @transform_9(%arg0: i32) -> (i32, i32) {
    %c0_i32 = arith.constant 0 : i32
    %c0_i32_0 = arith.constant 0 : i32
    %c0_i32_1 = arith.constant 0 : i32
    return %c0_i32, %c0_i32_0 : i32, i32
  }
  func.func @transform_10(%arg0: i32) -> (i32, i32) {
    %c0_i32 = arith.constant 0 : i32
    %c0_i32_0 = arith.constant 0 : i32
    %c0_i32_1 = arith.constant 0 : i32
    return %c0_i32, %c0_i32_0 : i32, i32
  }
}

</mosaic_0001>

<llo_original>
// kernel: _lambda_.1
$region0: #{_lambda_.1}
  #allocation0 [shape = 'u32[]', space=smem, size = 0x4, offset = 0x4, fixed_abs, tag = 'smem constant byte address 0x4 - core index']
  #allocation1 [shape = 'u32[144,128]{1,0:T(1,128)}', space=vmem, size = 0x12000, scoped, tag = 'internal scratch']
  %s0 = inlined_call_operand.vmem [shape: f32[32,8], index: 0, kind: input, shape index: {}]
  %s1 = inlined_call_operand.vmem [shape: f32[32,96], index: 1, kind: input, shape index: {}]
  %s2 = inlined_call_operand.vmem [shape: f32[2,32], index: 2, kind: input, shape index: {}]
  %s3 = inlined_call_operand.vmem [shape: f32[4,9,32], index: 3, kind: input, shape index: {}]
  %s4 = inlined_call_operand.vmem [shape: f32[4,33,64], index: 4, kind: input, shape index: {}]
  %s5 = inlined_call_operand.vmem [shape: f32[73,256], index: 5, kind: input, shape index: {}]
  %s6 = inlined_call_operand.vmem [shape: f32[129,128], index: 6, kind: input, shape index: {}]
  %s7 = inlined_call_operand.vmem [shape: f32[129,64], index: 7, kind: input, shape index: {}]
  %s8 = inlined_call_operand.vmem [shape: f32[65,1], index: 8, kind: input, shape index: {}]
  %s9 = inlined_call_operand.vmem [shape: f32[2,1], index: 9, kind: output, shape index: {0}]
  %s10 = inlined_call_operand.hbm [shape: f32[2,64], index: 10, kind: output, shape index: {1}]
  %11 = xla_tuple %s9, %s10
  %s12 = sld [smem:[#allocation0]]
  $region54: #{_lambda_.1} parent=0
    _
  %s14 = ssub.s32 1, %s12
  %s15 = scalar_select 0, %s14, %s12
  $region1: #{_lambda_.1} parent=0
    #allocation2 [shape = 'u8[1024]{0}', space=vmem, size = 0x400, scoped, tag = 'output window, operand 1, single buffered']
    #allocation3 [shape = 's32[1]{0}', space=sflag, size = 0x4, scoped, tag = 'scoped memory for _lambda_.1']
    %16 = vsyncpa [#allocation3], 0
    // Predicated region
    $region2: #{_lambda_.1} parent=1 // pred_check
      _
    $region3: #{_lambda_.1} parent=1 // pred_check_branch
      %18 = sbr.rel (0) target = $region5
    $region4: #{_lambda_.1} parent=1 // pred_region
      _
    $region5: #{_lambda_.1} parent=1 // pred_fallthru
      _
    // Predicated region
    $region6: #{_lambda_.1} parent=1 // pred_check
      _
    $region7: #{_lambda_.1} parent=1 // pred_check_branch
      %20 = sbr.rel (0) target = $region9
    $region8: #{_lambda_.1} parent=1 // pred_region
      _
    $region9: #{_lambda_.1} parent=1 // pred_fallthru
      _
    // Predicated region
    $region10: #{_lambda_.1} parent=1 // pred_check
      _
    $region11: #{_lambda_.1} parent=1 // pred_check_branch
      %22 = sbr.rel (0) target = $region13
    $region12: #{_lambda_.1} parent=1 // pred_region
      _
    $region13: #{_lambda_.1} parent=1 // pred_fallthru
      _
    // Predicated region
    $region14: #{_lambda_.1} parent=1 // pred_check
      _
    $region15: #{_lambda_.1} parent=1 // pred_check_branch
      %24 = sbr.rel (0) target = $region17
    $region16: #{_lambda_.1} parent=1 // pred_region
      _
    $region17: #{_lambda_.1} parent=1 // pred_fallthru
      _
    // Predicated region
    $region18: #{_lambda_.1} parent=1 // pred_check
      _
    $region19: #{_lambda_.1} parent=1 // pred_check_branch
      %26 = sbr.rel (0) target = $region21
    $region20: #{_lambda_.1} parent=1 // pred_region
      _
    $region21: #{_lambda_.1} parent=1 // pred_fallthru
      _
    // Predicated region
    $region22: #{_lambda_.1} parent=1 // pred_check
      _
    $region23: #{_lambda_.1} parent=1 // pred_check_branch
      %28 = sbr.rel (0) target = $region25
    $region24: #{_lambda_.1} parent=1 // pred_region
      _
    $region25: #{_lambda_.1} parent=1 // pred_fallthru
      _
    // Predicated region
    $region26: #{_lambda_.1} parent=1 // pred_check
      _
    $region27: #{_lambda_.1} parent=1 // pred_check_branch
      %30 = sbr.rel (0) target = $region29
    $region28: #{_lambda_.1} parent=1 // pred_region
      _
    $region29: #{_lambda_.1} parent=1 // pred_fallthru
      _
    // Predicated region
    $region30: #{_lambda_.1} parent=1 // pred_check
      _
    $region31: #{_lambda_.1} parent=1 // pred_check_branch
      %32 = sbr.rel (0) target = $region33
    $region32: #{_lambda_.1} parent=1 // pred_region
      _
    $region33: #{_lambda_.1} parent=1 // pred_fallthru
      _
    // Predicated region
    $region34: #{_lambda_.1} parent=1 // pred_check
      _
    $region35: #{_lambda_.1} parent=1 // pred_check_branch
      %34 = sbr.rel (0) target = $region37
    $region36: #{_lambda_.1} parent=1 // pred_region
      _
    $region37: #{_lambda_.1} parent=1 // pred_fallthru
      _
    %v35 = vld [vmem:[%s0] sm:$0xff]
    %v36 = vld [vmem:[%s0 + $0x8] sm:$0xff]
    %v37 = vld [vmem:[%s0 + $0x10] sm:$0xff]
    %v38 = vld [vmem:[%s0 + $0x18] sm:$0xff]
    %v39 = vld [vmem:[%s1] sm:$0xff]
    %v40 = vld [vmem:[%s1 + $0x8] sm:$0xff]
    %v41 = vld [vmem:[%s1 + $0x10] sm:$0xff]
    %v42 = vld [vmem:[%s1 + $0x18] sm:$0xff]
    %v43 = vld [vmem:[%s3] sm:$0xff]
    %v44 = vld [vmem:[%s3 + $0x8] sm:$0x1]
    %v45 = vlaneseq
    %v46 = vshrl.u32 %v45, 7
    %v47 = vsub.s32 0, %v46
    %v48 = vrot.slane %v44, %v47
    %vm49 = vcmask 64512
    %v51 = vsel %vm49, %v35, 0
    %v54 = vsel %vm49, %v36, 0
    %v57 = vsel %vm49, %v37, 0
    %v60 = vsel %vm49, %v38, 0
    %62 = vmatprep.subr.mxu0 0.0
    %63 = vmatpush1.msra.mxu0 %v43
    %64 = vmatprep.subr.mxu0 0.0
    %65 = vmatpush1.msra.mxu0 0.0
    %66 = vmatprep.subr.mxu0 0.0
    %67 = vmatpush1.msra.mxu0 0.0
    %68 = vmatprep.subr.mxu0 0.0
    %69 = vmatpush1.msra.mxu0 0.0
    %70 = vmatprep.subr.mxu0 0.0
    %71 = vmatpush1.msra.mxu0 0.0
    %72 = vmatprep.subr.mxu0 0.0
    %73 = vmatpush1.msra.mxu0 0.0
    %74 = vmatprep.subr.mxu0 0.0
    %75 = vmatpush1.msra.mxu0 0.0
    %76 = vmatprep.subr.mxu0 0.0
    %77 = vmatpush1.msra.mxu0 0.0
    %78 = vmatprep.subr.mxu0 0.0
    %79 = vmatpush1.msra.mxu0 0.0
    %80 = vmatprep.subr.mxu0 0.0
    %81 = vmatpush1.msra.mxu0 0.0
    %82 = vmatprep.subr.mxu0 0.0
    %83 = vmatpush1.msra.mxu0 0.0
    %84 = vmatprep.subr.mxu0 0.0
    %85 = vmatpush1.msra.mxu0 0.0
    %86 = vmatprep.subr.mxu0 0.0
    %87 = vmatpush1.msra.mxu0 0.0
    %88 = vmatprep.subr.mxu0 0.0
    %89 = vmatpush1.msra.mxu0 0.0
    %90 = vmatprep.subr.mxu0 0.0
    %91 = vmatpush1.msra.mxu0 0.0
    %92 = vmatprep.subr.mxu0 0.0
    %93 = vmatpush1.msra.mxu0 0.0
    %94 = vmatprep.subr.mxu0 0.0
    %95 = vmatpush1.msra.mxu0 0.0
    %96 = vmatprep.subr.mxu0 0.0
    %97 = vmatpush1.msra.mxu0 0.0
    %98 = vmatprep.subr.mxu0 0.0
    %99 = vmatpush1.msra.mxu0 0.0
    %100 = vmatprep.subr.mxu0 0.0
    %101 = vmatpush1.msra.mxu0 0.0
    %102 = vmatprep.subr.mxu0 0.0
    %103 = vmatpush1.msra.mxu0 0.0
    %104 = vmatprep.subr.mxu0 0.0
    %105 = vmatpush1.msra.mxu0 0.0
    %106 = vmatprep.subr.mxu0 0.0
    %107 = vmatpush1.msra.mxu0 0.0
    %108 = vmatprep.subr.mxu0 0.0
    %109 = vmatpush1.msra.mxu0 0.0
    %110 = vmatprep.subr.mxu0 0.0
    %111 = vmatpush1.msra.mxu0 0.0
    %112 = vmatprep.subr.mxu0 0.0
    %113 = vmatpush1.msra.mxu0 0.0
    %114 = vmatprep.subr.mxu0 0.0
    %115 = vmatpush1.msra.mxu0 0.0
    %116 = vmatprep.subr.mxu0 0.0
    %117 = vmatpush1.msra.mxu0 0.0
    %118 = vmatprep.subr.mxu0 0.0
    %119 = vmatpush1.msra.mxu0 0.0
    %120 = vmatprep.subr.mxu0 0.0
    %121 = vmatpush1.msra.mxu0 0.0
    %122 = vmatprep.subr.mxu0 0.0
    %123 = vmatpush1.msra.mxu0 0.0
    %124 = vmatprep.subr.mxu0 0.0
    %125 = vmatpush1.msra.mxu0 0.0
    %126 = vmatprep.mubr.f32.mxu0 0.0
    %127 = vmatmul.mubr.f32.gmra.mrb[0].mxu0 %v51
    %v128 = vpop.f32.mrb[0].mxu0
    %v129 = vadd.f32 %v48, %v128
    %v130 = vpop.f32.mrb[0].mxu0
    %131 = vmatprep.mubr.f32.mxu0 0.0
    %132 = vmatmul.mubr.f32.gmra.mrb[0].mxu0 %v54
    %v133 = vpop.f32.mrb[0].mxu0
    %v134 = vadd.f32 %v48, %v133
    %v135 = vpop.f32.mrb[0].mxu0
    %136 = vmatprep.mubr.f32.mxu0 0.0
    %137 = vmatmul.mubr.f32.gmra.mrb[0].mxu0 %v57
    %v138 = vpop.f32.mrb[0].mxu0
    %v139 = vadd.f32 %v48, %v138
    %v140 = vpop.f32.mrb[0].mxu0
    %141 = vmatprep.mubr.f32.mxu0 0.0
    %142 = vmatmul.mubr.f32.gmra.mrb[0].mxu0 %v60
    %v143 = vpop.f32.mrb[0].mxu0
    %v144 = vadd.f32 %v48, %v143
    %v145 = vpop.f32.mrb[0].mxu0
    %146 = vdwg.mxu0
    %s147 = scalar_lea.vmem %s3, 16
    %v148 = vld [vmem:[%s147] sm:$0xff]
    %v149 = vld [vmem:[%s147 + $0x8] sm:$0x1]
    %v150 = vlaneseq
    %v151 = vshrl.u32 %v150, 7
    %v152 = vsub.s32 0, %v151
    %v153 = vrot.slane %v149, %v152
    %154 = vmatprep.subr.mxu0 0.0
    %155 = vmatpush1.msra.mxu0 %v148
    %156 = vmatprep.subr.mxu0 0.0
    %157 = vmatpush1.msra.mxu0 0.0
    %158 = vmatprep.subr.mxu0 0.0
    %159 = vmatpush1.msra.mxu0 0.0
    %160 = vmatprep.subr.mxu0 0.0
    %161 = vmatpush1.msra.mxu0 0.0
    %162 = vmatprep.subr.mxu0 0.0
    %163 = vmatpush1.msra.mxu0 0.0
    %164 = vmatprep.subr.mxu0 0.0
    %165 = vmatpush1.msra.mxu0 0.0
    %166 = vmatprep.subr.mxu0 0.0
    %167 = vmatpush1.msra.mxu0 0.0
    %168 = vmatprep.subr.mxu0 0.0
    %169 = vmatpush1.msra.mxu0 0.0
    %170 = vmatprep.subr.mxu0 0.0
    %171 = vmatpush1.msra.mxu0 0.0
    %172 = vmatprep.subr.mxu0 0.0
    %173 = vmatpush1.msra.mxu0 0.0
    %174 = vmatprep.subr.mxu0 0.0
    %175 = vmatpush1.msra.mxu0 0.0
    %176 = vmatprep.subr.mxu0 0.0
    %177 = vmatpush1.msra.mxu0 0.0
    %178 = vmatprep.subr.mxu0 0.0
    %179 = vmatpush1.msra.mxu0 0.0
    %180 = vmatprep.subr.mxu0 0.0
    %181 = vmatpush1.msra.mxu0 0.0
    %182 = vmatprep.subr.mxu0 0.0
    %183 = vmatpush1.msra.mxu0 0.0
    %184 = vmatprep.subr.mxu0 0.0
    %185 = vmatpush1.msra.mxu0 0.0
    %186 = vmatprep.subr.mxu0 0.0
    %187 = vmatpush1.msra.mxu0 0.0
    %188 = vmatprep.subr.mxu0 0.0
    %189 = vmatpush1.msra.mxu0 0.0
    %190 = vmatprep.subr.mxu0 0.0
    %191 = vmatpush1.msra.mxu0 0.0
    %192 = vmatprep.subr.mxu0 0.0
    %193 = vmatpush1.msra.mxu0 0.0
    %194 = vmatprep.subr.mxu0 0.0
    %195 = vmatpush1.msra.mxu0 0.0
    %196 = vmatprep.subr.mxu0 0.0
    %197 = vmatpush1.msra.mxu0 0.0
    %198 = vmatprep.subr.mxu0 0.0
    %199 = vmatpush1.msra.mxu0 0.0
    %200 = vmatprep.subr.mxu0 0.0
    %201 = vmatpush1.msra.mxu0 0.0
    %202 = vmatprep.subr.mxu0 0.0
    %203 = vmatpush1.msra.mxu0 0.0
    %204 = vmatprep.subr.mxu0 0.0
    %205 = vmatpush1.msra.mxu0 0.0
    %206 = vmatprep.subr.mxu0 0.0
    %207 = vmatpush1.msra.mxu0 0.0
    %208 = vmatprep.subr.mxu0 0.0
    %209 = vmatpush1.msra.mxu0 0.0
    %210 = vmatprep.subr.mxu0 0.0
    %211 = vmatpush1.msra.mxu0 0.0
    %212 = vmatprep.subr.mxu0 0.0
    %213 = vmatpush1.msra.mxu0 0.0
    %214 = vmatprep.subr.mxu0 0.0
    %215 = vmatpush1.msra.mxu0 0.0
    %216 = vmatprep.subr.mxu0 0.0
    %217 = vmatpush1.msra.mxu0 0.0
    %218 = vmatprep.mubr.f32.mxu0 0.0
    %219 = vmatmul.mubr.f32.gmra.mrb[0].mxu0 %v51
    %v220 = vpop.f32.mrb[0].mxu0
    %v221 = vadd.f32 %v153, %v220
    %v222 = vpop.f32.mrb[0].mxu0
    %223 = vmatprep.mubr.f32.mxu0 0.0
    %224 = vmatmul.mubr.f32.gmra.mrb[0].mxu0 %v54
    %v225 = vpop.f32.mrb[0].mxu0
    %v226 = vadd.f32 %v153, %v225
    %v227 = vpop.f32.mrb[0].mxu0
    %228 = vmatprep.mubr.f32.mxu0 0.0
    %229 = vmatmul.mubr.f32.gmra.mrb[0].mxu0 %v57
    %v230 = vpop.f32.mrb[0].mxu0
    %v231 = vadd.f32 %v153, %v230
    %v232 = vpop.f32.mrb[0].mxu0
    %233 = vmatprep.mubr.f32.mxu0 0.0
    %234 = vmatmul.mubr.f32.gmra.mrb[0].mxu0 %v60
    %v235 = vpop.f32.mrb[0].mxu0
    %v236 = vadd.f32 %v153, %v235
    %v237 = vpop.f32.mrb[0].mxu0
    %238 = vdwg.mxu0
    %s239 = scalar_lea.vmem %s3, 32
    %v240 = vld [vmem:[%s239] sm:$0xff]
    %v241 = vld [vmem:[%s239 + $0x8] sm:$0x1]
    %v242 = vlaneseq
    %v243 = vshrl.u32 %v242, 7
    %v244 = vsub.s32 0, %v243
    %v245 = vrot.slane %v241, %v244
    %246 = vmatprep.subr.mxu0 0.0
    %247 = vmatpush1.msra.mxu0 %v240
    %248 = vmatprep.subr.mxu0 0.0
    %249 = vmatpush1.msra.mxu0 0.0
    %250 = vmatprep.subr.mxu0 0.0
    %251 = vmatpush1.msra.mxu0 0.0
    %252 = vmatprep.subr.mxu0 0.0
    %253 = vmatpush1.msra.mxu0 0.0
    %254 = vmatprep.subr.mxu0 0.0
    %255 = vmatpush1.msra.mxu0 0.0
    %256 = vmatprep.subr.mxu0 0.0
    %257 = vmatpush1.msra.mxu0 0.0
    %258 = vmatprep.subr.mxu0 0.0
    %259 = vmatpush1.msra.mxu0 0.0
    %260 = vmatprep.subr.mxu0 0.0
    %261 = vmatpush1.msra.mxu0 0.0
    %262 = vmatprep.subr.mxu0 0.0
    %263 = vmatpush1.msra.mxu0 0.0
    %264 = vmatprep.subr.mxu0 0.0
    %265 = vmatpush1.msra.mxu0 0.0
    %266 = vmatprep.subr.mxu0 0.0
    %267 = vmatpush1.msra.mxu0 0.0
    %268 = vmatprep.subr.mxu0 0.0
    %269 = vmatpush1.msra.mxu0 0.0
    %270 = vmatprep.subr.mxu0 0.0
    %271 = vmatpush1.msra.mxu0 0.0
    %272 = vmatprep.subr.mxu0 0.0
    %273 = vmatpush1.msra.mxu0 0.0
    %274 = vmatprep.subr.mxu0 0.0
    %275 = vmatpush1.msra.mxu0 0.0
    %276 = vmatprep.subr.mxu0 0.0
    %277 = vmatpush1.msra.mxu0 0.0
    %278 = vmatprep.subr.mxu0 0.0
    %279 = vmatpush1.msra.mxu0 0.0
    %280 = vmatprep.subr.mxu0 0.0
    %281 = vmatpush1.msra.mxu0 0.0
    %282 = vmatprep.subr.mxu0 0.0
    %283 = vmatpush1.msra.mxu0 0.0
    %284 = vmatprep.subr.mxu0 0.0
    %285 = vmatpush1.msra.mxu0 0.0
    %286 = vmatprep.subr.mxu0 0.0
    %287 = vmatpush1.msra.mxu0 0.0
    %288 = vmatprep.subr.mxu0 0.0
    %289 = vmatpush1.msra.mxu0 0.0
    %290 = vmatprep.subr.mxu0 0.0
    %291 = vmatpush1.msra.mxu0 0.0
    %292 = vmatprep.subr.mxu0 0.0
    %293 = vmatpush1.msra.mxu0 0.0
    %294 = vmatprep.subr.mxu0 0.0
    %295 = vmatpush1.msra.mxu0 0.0
    %296 = vmatprep.subr.mxu0 0.0
    %297 = vmatpush1.msra.mxu0 0.0
    %298 = vmatprep.subr.mxu0 0.0
    %299 = vmatpush1.msra.mxu0 0.0
    %300 = vmatprep.subr.mxu0 0.0
    %301 = vmatpush1.msra.mxu0 0.0
    %302 = vmatprep.subr.mxu0 0.0
    %303 = vmatpush1.msra.mxu0 0.0
    %304 = vmatprep.subr.mxu0 0.0
    %305 = vmatpush1.msra.mxu0 0.0
    %306 = vmatprep.subr.mxu0 0.0
    %307 = vmatpush1.msra.mxu0 0.0
    %308 = vmatprep.subr.mxu0 0.0
    %309 = vmatpush1.msra.mxu0 0.0
    %310 = vmatprep.mubr.f32.mxu0 0.0
    %311 = vmatmul.mubr.f32.gmra.mrb[0].mxu0 %v51
    %v312 = vpop.f32.mrb[0].mxu0
    %v313 = vadd.f32 %v245, %v312
    %v314 = vpop.f32.mrb[0].mxu0
    %315 = vmatprep.mubr.f32.mxu0 0.0
    %316 = vmatmul.mubr.f32.gmra.mrb[0].mxu0 %v54
    %v317 = vpop.f32.mrb[0].mxu0
    %v318 = vadd.f32 %v245, %v317
    %v319 = vpop.f32.mrb[0].mxu0
    %320 = vmatprep.mubr.f32.mxu0 0.0
    %321 = vmatmul.mubr.f32.gmra.mrb[0].mxu0 %v57
    %v322 = vpop.f32.mrb[0].mxu0
    %v323 = vadd.f32 %v245, %v322
    %v324 = vpop.f32.mrb[0].mxu0
    %325 = vmatprep.mubr.f32.mxu0 0.0
    %326 = vmatmul.mubr.f32.gmra.mrb[0].mxu0 %v60
    %v327 = vpop.f32.mrb[0].mxu0
    %v328 = vadd.f32 %v245, %v327
    %v329 = vpop.f32.mrb[0].mxu0
    %330 = vdwg.mxu0
    %s331 = scalar_lea.vmem %s3, 48
    %v332 = vld [vmem:[%s331] sm:$0xff]
    %v333 = vld [vmem:[%s331 + $0x8] sm:$0x1]
    %v334 = vlaneseq
    %v335 = vshrl.u32 %v334, 7
    %v336 = vsub.s32 0, %v335
    %v337 = vrot.slane %v333, %v336
    %338 = vmatprep.subr.mxu0 0.0
    %339 = vmatpush1.msra.mxu0 %v332
    %340 = vmatprep.subr.mxu0 0.0
    %341 = vmatpush1.msra.mxu0 0.0
    %342 = vmatprep.subr.mxu0 0.0
    %343 = vmatpush1.msra.mxu0 0.0
    %344 = vmatprep.subr.mxu0 0.0
    %345 = vmatpush1.msra.mxu0 0.0
    %346 = vmatprep.subr.mxu0 0.0
    %347 = vmatpush1.msra.mxu0 0.0
    %348 = vmatprep.subr.mxu0 0.0
    %349 = vmatpush1.msra.mxu0 0.0
    %350 = vmatprep.subr.mxu0 0.0
    %351 = vmatpush1.msra.mxu0 0.0
    %352 = vmatprep.subr.mxu0 0.0
    %353 = vmatpush1.msra.mxu0 0.0
    %354 = vmatprep.subr.mxu0 0.0
    %355 = vmatpush1.msra.mxu0 0.0
    %356 = vmatprep.subr.mxu0 0.0
    %357 = vmatpush1.msra.mxu0 0.0
    %358 = vmatprep.subr.mxu0 0.0
    %359 = vmatpush1.msra.mxu0 0.0
    %360 = vmatprep.subr.mxu0 0.0
    %361 = vmatpush1.msra.mxu0 0.0
    %362 = vmatprep.subr.mxu0 0.0
    %363 = vmatpush1.msra.mxu0 0.0
    %364 = vmatprep.subr.mxu0 0.0
    %365 = vmatpush1.msra.mxu0 0.0
    %366 = vmatprep.subr.mxu0 0.0
    %367 = vmatpush1.msra.mxu0 0.0
    %368 = vmatprep.subr.mxu0 0.0
    %369 = vmatpush1.msra.mxu0 0.0
    %370 = vmatprep.subr.mxu0 0.0
    %371 = vmatpush1.msra.mxu0 0.0
    %372 = vmatprep.subr.mxu0 0.0
    %373 = vmatpush1.msra.mxu0 0.0
    %374 = vmatprep.subr.mxu0 0.0
    %375 = vmatpush1.msra.mxu0 0.0
    %376 = vmatprep.subr.mxu0 0.0
    %377 = vmatpush1.msra.mxu0 0.0
    %378 = vmatprep.subr.mxu0 0.0
    %379 = vmatpush1.msra.mxu0 0.0
    %380 = vmatprep.subr.mxu0 0.0
    %381 = vmatpush1.msra.mxu0 0.0
    %382 = vmatprep.subr.mxu0 0.0
    %383 = vmatpush1.msra.mxu0 0.0
    %384 = vmatprep.subr.mxu0 0.0
    %385 = vmatpush1.msra.mxu0 0.0
    %386 = vmatprep.subr.mxu0 0.0
    %387 = vmatpush1.msra.mxu0 0.0
    %388 = vmatprep.subr.mxu0 0.0
    %389 = vmatpush1.msra.mxu0 0.0
    %390 = vmatprep.subr.mxu0 0.0
    %391 = vmatpush1.msra.mxu0 0.0
    %392 = vmatprep.subr.mxu0 0.0
    %393 = vmatpush1.msra.mxu0 0.0
    %394 = vmatprep.subr.mxu0 0.0
    %395 = vmatpush1.msra.mxu0 0.0
    %396 = vmatprep.subr.mxu0 0.0
    %397 = vmatpush1.msra.mxu0 0.0
    %398 = vmatprep.subr.mxu0 0.0
    %399 = vmatpush1.msra.mxu0 0.0
    %400 = vmatprep.subr.mxu0 0.0
    %401 = vmatpush1.msra.mxu0 0.0
    %402 = vmatprep.mubr.f32.mxu0 0.0
    %403 = vmatmul.mubr.f32.gmra.mrb[0].mxu0 %v51
    %v404 = vpop.f32.mrb[0].mxu0
    %v405 = vadd.f32 %v337, %v404
    %v406 = vpop.f32.mrb[0].mxu0
    %407 = vmatprep.mubr.f32.mxu0 0.0
    %408 = vmatmul.mubr.f32.gmra.mrb[0].mxu0 %v54
    %v409 = vpop.f32.mrb[0].mxu0
    %v410 = vadd.f32 %v337, %v409
    %v411 = vpop.f32.mrb[0].mxu0
    %412 = vmatprep.mubr.f32.mxu0 0.0
    %413 = vmatmul.mubr.f32.gmra.mrb[0].mxu0 %v57
    %v414 = vpop.f32.mrb[0].mxu0
    %v415 = vadd.f32 %v337, %v414
    %v416 = vpop.f32.mrb[0].mxu0
    %417 = vmatprep.mubr.f32.mxu0 0.0
    %418 = vmatmul.mubr.f32.gmra.mrb[0].mxu0 %v60
    %v419 = vpop.f32.mrb[0].mxu0
    %v420 = vadd.f32 %v337, %v419
    %v421 = vpop.f32.mrb[0].mxu0
    %422 = vdwg.mxu0
    %vm423 = vcmask 785408
    %v425 = vsel %vm423, %v39, 0
    %v428 = vsel %vm423, %v40, 0
    %v431 = vsel %vm423, %v41, 0
    %v434 = vsel %vm423, %v42, 0
    %436 = vmatprep.subr.mxu0 0.0
    %437 = vmatpush1.msra.mxu0 %v129
    %438 = vmatprep.subr.mxu0 0.0
    %439 = vmatpush1.msra.mxu0 %v134
    %440 = vmatprep.subr.mxu0 0.0
    %441 = vmatpush1.msra.mxu0 %v139
    %442 = vmatprep.subr.mxu0 0.0
    %443 = vmatpush1.msra.mxu0 %v144
    %444 = vmatprep.subr.mxu0 0.0
    %445 = vmatpush1.msra.mxu0 %v221
    %446 = vmatprep.subr.mxu0 0.0
    %447 = vmatpush1.msra.mxu0 %v226
    %448 = vmatprep.subr.mxu0 0.0
    %449 = vmatpush1.msra.mxu0 %v231
    %450 = vmatprep.subr.mxu0 0.0
    %451 = vmatpush1.msra.mxu0 %v236
    %452 = vmatprep.subr.mxu0 0.0
    %453 = vmatpush1.msra.mxu0 %v313
    %454 = vmatprep.subr.mxu0 0.0
    %455 = vmatpush1.msra.mxu0 %v318
    %456 = vmatprep.subr.mxu0 0.0
    %457 = vmatpush1.msra.mxu0 %v323
    %458 = vmatprep.subr.mxu0 0.0
    %459 = vmatpush1.msra.mxu0 %v328
    %460 = vmatprep.subr.mxu0 0.0
    %461 = vmatpush1.msra.mxu0 0.0
    %462 = vmatprep.subr.mxu0 0.0
    %463 = vmatpush1.msra.mxu0 0.0
    %464 = vmatprep.subr.mxu0 0.0
    %465 = vmatpush1.msra.mxu0 0.0
    %466 = vmatprep.subr.mxu0 0.0
    %467 = vmatpush1.msra.mxu0 0.0
    %468 = vmatprep.subr.mxu0 0.0
    %469 = vmatpush1.msra.mxu0 0.0
    %470 = vmatprep.subr.mxu0 0.0
    %471 = vmatpush1.msra.mxu0 0.0
    %472 = vmatprep.subr.mxu0 0.0
    %473 = vmatpush1.msra.mxu0 0.0
    %474 = vmatprep.subr.mxu0 0.0
    %475 = vmatpush1.msra.mxu0 0.0
    %476 = vmatprep.subr.mxu0 0.0
    %477 = vmatpush1.msra.mxu0 0.0
    %478 = vmatprep.subr.mxu0 0.0
    %479 = vmatpush1.msra.mxu0 0.0
    %480 = vmatprep.subr.mxu0 0.0
    %481 = vmatpush1.msra.mxu0 0.0
    %482 = vmatprep.subr.mxu0 0.0
    %483 = vmatpush1.msra.mxu0 0.0
    %484 = vmatprep.subr.mxu0 0.0
    %485 = vmatpush1.msra.mxu0 0.0
    %486 = vmatprep.subr.mxu0 0.0
    %487 = vmatpush1.msra.mxu0 0.0
    %488 = vmatprep.subr.mxu0 0.0
    %489 = vmatpush1.msra.mxu0 0.0
    %490 = vmatprep.subr.mxu0 0.0
    %491 = vmatpush1.msra.mxu0 0.0
    %492 = vmatprep.subr.mxu0 0.0
    %493 = vmatpush1.msra.mxu0 0.0
    %494 = vmatprep.subr.mxu0 0.0
    %495 = vmatpush1.msra.mxu0 0.0
    %496 = vmatprep.subr.mxu0 0.0
    %497 = vmatpush1.msra.mxu0 0.0
    %498 = vmatprep.subr.mxu0 0.0
    %499 = vmatpush1.msra.mxu0 0.0
    %500 = vmatprep.mubr.f32.mxu0 0.0
    %501 = vmatmul.mubr.f32.gmra.mrb[0].mxu0 %v425
    %v502 = vpop.f32.mrb[0].mxu0
    %v503 = vadd.f32 %v405, %v502
    %v504 = vpop.f32.mrb[0].mxu0
    %505 = vmatprep.mubr.f32.mxu0 0.0
    %506 = vmatmul.mubr.f32.gmra.mrb[0].mxu0 %v428
    %v507 = vpop.f32.mrb[0].mxu0
    %v508 = vadd.f32 %v410, %v507
    %v509 = vpop.f32.mrb[0].mxu0
    %510 = vmatprep.mubr.f32.mxu0 0.0
    %511 = vmatmul.mubr.f32.gmra.mrb[0].mxu0 %v431
    %v512 = vpop.f32.mrb[0].mxu0
    %v513 = vadd.f32 %v415, %v512
    %v514 = vpop.f32.mrb[0].mxu0
    %515 = vmatprep.mubr.f32.mxu0 0.0
    %516 = vmatmul.mubr.f32.gmra.mrb[0].mxu0 %v434
    %v517 = vpop.f32.mrb[0].mxu0
    %v518 = vadd.f32 %v420, %v517
    %v519 = vpop.f32.mrb[0].mxu0
    %520 = vdwg.mxu0
    %v521 = vtanh.pop %v503
    %v522 = vtanh.pop %v508
    %v523 = vtanh.pop %v513
    %v524 = vtanh.pop %v518
    %v525 = vld [vmem:[%s4] sm:$0xff]
    %v526 = vld [vmem:[%s4 + $0x8] sm:$0xff]
    %v527 = vld [vmem:[%s4 + $0x10] sm:$0xff]
    %v528 = vld [vmem:[%s4 + $0x18] sm:$0xff]
    %v529 = vld [vmem:[%s4 + $0x20] sm:$0x1]
    %v530 = vlaneseq
    %v531 = vshrl.u32 %v530, 7
    %v532 = vsub.s32 0, %v531
    %v533 = vrot.slane %v529, %v532
    %vm534 = vcmask 261120
    %v536 = vsel %vm534, %v521, 0
    %v539 = vsel %vm534, %v522, 0
    %v542 = vsel %vm534, %v523, 0
    %v545 = vsel %vm534, %v524, 0
    %547 = vmatprep.subr.mxu0 0.0
    %548 = vmatpush1.msra.mxu0 %v525
    %549 = vmatprep.subr.mxu0 0.0
    %550 = vmatpush1.msra.mxu0 %v526
    %551 = vmatprep.subr.mxu0 0.0
    %552 = vmatpush1.msra.mxu0 %v527
    %553 = vmatprep.subr.mxu0 0.0
    %554 = vmatpush1.msra.mxu0 %v528
    %555 = vmatprep.subr.mxu0 0.0
    %556 = vmatpush1.msra.mxu0 0.0
    %557 = vmatprep.subr.mxu0 0.0
    %558 = vmatpush1.msra.mxu0 0.0
    %559 = vmatprep.subr.mxu0 0.0
    %560 = vmatpush1.msra.mxu0 0.0
    %561 = vmatprep.subr.mxu0 0.0
    %562 = vmatpush1.msra.mxu0 0.0
    %563 = vmatprep.subr.mxu0 0.0
    %564 = vmatpush1.msra.mxu0 0.0
    %565 = vmatprep.subr.mxu0 0.0
    %566 = vmatpush1.msra.mxu0 0.0
    %567 = vmatprep.subr.mxu0 0.0
    %568 = vmatpush1.msra.mxu0 0.0
    %569 = vmatprep.subr.mxu0 0.0
    %570 = vmatpush1.msra.mxu0 0.0
    %571 = vmatprep.subr.mxu0 0.0
    %572 = vmatpush1.msra.mxu0 0.0
    %573 = vmatprep.subr.mxu0 0.0
    %574 = vmatpush1.msra.mxu0 0.0
    %575 = vmatprep.subr.mxu0 0.0
    %576 = vmatpush1.msra.mxu0 0.0
    %577 = vmatprep.subr.mxu0 0.0
    %578 = vmatpush1.msra.mxu0 0.0
    %579 = vmatprep.subr.mxu0 0.0
    %580 = vmatpush1.msra.mxu0 0.0
    %581 = vmatprep.subr.mxu0 0.0
    %582 = vmatpush1.msra.mxu0 0.0
    %583 = vmatprep.subr.mxu0 0.0
    %584 = vmatpush1.msra.mxu0 0.0
    %585 = vmatprep.subr.mxu0 0.0
    %586 = vmatpush1.msra.mxu0 0.0
    %587 = vmatprep.subr.mxu0 0.0
    %588 = vmatpush1.msra.mxu0 0.0
    %589 = vmatprep.subr.mxu0 0.0
    %590 = vmatpush1.msra.mxu0 0.0
    %591 = vmatprep.subr.mxu0 0.0
    %592 = vmatpush1.msra.mxu0 0.0
    %593 = vmatprep.subr.mxu0 0.0
    %594 = vmatpush1.msra.mxu0 0.0
    %595 = vmatprep.subr.mxu0 0.0
    %596 = vmatpush1.msra.mxu0 0.0
    %597 = vmatprep.subr.mxu0 0.0
    %598 = vmatpush1.msra.mxu0 0.0
    %599 = vmatprep.subr.mxu0 0.0
    %600 = vmatpush1.msra.mxu0 0.0
    %601 = vmatprep.subr.mxu0 0.0
    %602 = vmatpush1.msra.mxu0 0.0
    %603 = vmatprep.subr.mxu0 0.0
    %604 = vmatpush1.msra.mxu0 0.0
    %605 = vmatprep.subr.mxu0 0.0
    %606 = vmatpush1.msra.mxu0 0.0
    %607 = vmatprep.subr.mxu0 0.0
    %608 = vmatpush1.msra.mxu0 0.0
    %609 = vmatprep.subr.mxu0 0.0
    %610 = vmatpush1.msra.mxu0 0.0
    %611 = vmatprep.mubr.f32.mxu0 0.0
    %612 = vmatmul.mubr.f32.gmra.mrb[0].mxu0 %v536
    %v613 = vpop.f32.mrb[0].mxu0
    %v614 = vadd.f32 %v533, %v613
    %v615 = vpop.f32.mrb[0].mxu0
    %616 = vmatprep.mubr.f32.mxu0 0.0
    %617 = vmatmul.mubr.f32.gmra.mrb[0].mxu0 %v539
    %v618 = vpop.f32.mrb[0].mxu0
    %v619 = vadd.f32 %v533, %v618
    %v620 = vpop.f32.mrb[0].mxu0
    %621 = vmatprep.mubr.f32.mxu0 0.0
    %622 = vmatmul.mubr.f32.gmra.mrb[0].mxu0 %v542
    %v623 = vpop.f32.mrb[0].mxu0
    %v624 = vadd.f32 %v533, %v623
    %v625 = vpop.f32.mrb[0].mxu0
    %626 = vmatprep.mubr.f32.mxu0 0.0
    %627 = vmatmul.mubr.f32.gmra.mrb[0].mxu0 %v545
    %v628 = vpop.f32.mrb[0].mxu0
    %v629 = vadd.f32 %v533, %v628
    %v630 = vpop.f32.mrb[0].mxu0
    %631 = vdwg.mxu0
    %s632 = scalar_lea.vmem %s4, 40
    %v633 = vld [vmem:[%s632] sm:$0xff]
    %v634 = vld [vmem:[%s632 + $0x8] sm:$0xff]
    %v635 = vld [vmem:[%s632 + $0x10] sm:$0xff]
    %v636 = vld [vmem:[%s632 + $0x18] sm:$0xff]
    %v637 = vld [vmem:[%s632 + $0x20] sm:$0x1]
    %v638 = vlaneseq
    %v639 = vshrl.u32 %v638, 7
    %v640 = vsub.s32 0, %v639
    %v641 = vrot.slane %v637, %v640
    %642 = vmatprep.subr.mxu0 0.0
    %643 = vmatpush1.msra.mxu0 %v633
    %644 = vmatprep.subr.mxu0 0.0
    %645 = vmatpush1.msra.mxu0 %v634
    %646 = vmatprep.subr.mxu0 0.0
    %647 = vmatpush1.msra.mxu0 %v635
    %648 = vmatprep.subr.mxu0 0.0
    %649 = vmatpush1.msra.mxu0 %v636
    %650 = vmatprep.subr.mxu0 0.0
    %651 = vmatpush1.msra.mxu0 0.0
    %652 = vmatprep.subr.mxu0 0.0
    %653 = vmatpush1.msra.mxu0 0.0
    %654 = vmatprep.subr.mxu0 0.0
    %655 = vmatpush1.msra.mxu0 0.0
    %656 = vmatprep.subr.mxu0 0.0
    %657 = vmatpush1.msra.mxu0 0.0
    %658 = vmatprep.subr.mxu0 0.0
    %659 = vmatpush1.msra.mxu0 0.0
    %660 = vmatprep.subr.mxu0 0.0
    %661 = vmatpush1.msra.mxu0 0.0
    %662 = vmatprep.subr.mxu0 0.0
    %663 = vmatpush1.msra.mxu0 0.0
    %664 = vmatprep.subr.mxu0 0.0
    %665 = vmatpush1.msra.mxu0 0.0
    %666 = vmatprep.subr.mxu0 0.0
    %667 = vmatpush1.msra.mxu0 0.0
    %668 = vmatprep.subr.mxu0 0.0
    %669 = vmatpush1.msra.mxu0 0.0
    %670 = vmatprep.subr.mxu0 0.0
    %671 = vmatpush1.msra.mxu0 0.0
    %672 = vmatprep.subr.mxu0 0.0
    %673 = vmatpush1.msra.mxu0 0.0
    %674 = vmatprep.subr.mxu0 0.0
    %675 = vmatpush1.msra.mxu0 0.0
    %676 = vmatprep.subr.mxu0 0.0
    %677 = vmatpush1.msra.mxu0 0.0
    %678 = vmatprep.subr.mxu0 0.0
    %679 = vmatpush1.msra.mxu0 0.0
    %680 = vmatprep.subr.mxu0 0.0
    %681 = vmatpush1.msra.mxu0 0.0
    %682 = vmatprep.subr.mxu0 0.0
    %683 = vmatpush1.msra.mxu0 0.0
    %684 = vmatprep.subr.mxu0 0.0
    %685 = vmatpush1.msra.mxu0 0.0
    %686 = vmatprep.subr.mxu0 0.0
    %687 = vmatpush1.msra.mxu0 0.0
    %688 = vmatprep.subr.mxu0 0.0
    %689 = vmatpush1.msra.mxu0 0.0
    %690 = vmatprep.subr.mxu0 0.0
    %691 = vmatpush1.msra.mxu0 0.0
    %692 = vmatprep.subr.mxu0 0.0
    %693 = vmatpush1.msra.mxu0 0.0
    %694 = vmatprep.subr.mxu0 0.0
    %695 = vmatpush1.msra.mxu0 0.0
    %696 = vmatprep.subr.mxu0 0.0
    %697 = vmatpush1.msra.mxu0 0.0
    %698 = vmatprep.subr.mxu0 0.0
    %699 = vmatpush1.msra.mxu0 0.0
    %700 = vmatprep.subr.mxu0 0.0
    %701 = vmatpush1.msra.mxu0 0.0
    %702 = vmatprep.subr.mxu0 0.0
    %703 = vmatpush1.msra.mxu0 0.0
    %704 = vmatprep.subr.mxu0 0.0
    %705 = vmatpush1.msra.mxu0 0.0
    %706 = vmatprep.mubr.f32.mxu0 0.0
    %707 = vmatmul.mubr.f32.gmra.mrb[0].mxu0 %v536
    %v708 = vpop.f32.mrb[0].mxu0
    %v709 = vadd.f32 %v641, %v708
    %v710 = vpop.f32.mrb[0].mxu0
    %711 = vmatprep.mubr.f32.mxu0 0.0
    %712 = vmatmul.mubr.f32.gmra.mrb[0].mxu0 %v539
    %v713 = vpop.f32.mrb[0].mxu0
    %v714 = vadd.f32 %v641, %v713
    %v715 = vpop.f32.mrb[0].mxu0
    %716 = vmatprep.mubr.f32.mxu0 0.0
    %717 = vmatmul.mubr.f32.gmra.mrb[0].mxu0 %v542
    %v718 = vpop.f32.mrb[0].mxu0
    %v719 = vadd.f32 %v641, %v718
    %v720 = vpop.f32.mrb[0].mxu0
    %721 = vmatprep.mubr.f32.mxu0 0.0
    %722 = vmatmul.mubr.f32.gmra.mrb[0].mxu0 %v545
    %v723 = vpop.f32.mrb[0].mxu0
    %v724 = vadd.f32 %v641, %v723
    %v725 = vpop.f32.mrb[0].mxu0
    %726 = vdwg.mxu0
    %s727 = scalar_lea.vmem %s4, 80
    %v728 = vld [vmem:[%s727] sm:$0xff]
    %v729 = vld [vmem:[%s727 + $0x8] sm:$0xff]
    %v730 = vld [vmem:[%s727 + $0x10] sm:$0xff]
    %v731 = vld [vmem:[%s727 + $0x18] sm:$0xff]
    %v732 = vld [vmem:[%s727 + $0x20] sm:$0x1]
    %v733 = vlaneseq
    %v734 = vshrl.u32 %v733, 7
    %v735 = vsub.s32 0, %v734
    %v736 = vrot.slane %v732, %v735
    %737 = vmatprep.subr.mxu0 0.0
    %738 = vmatpush1.msra.mxu0 %v728
    %739 = vmatprep.subr.mxu0 0.0
    %740 = vmatpush1.msra.mxu0 %v729
    %741 = vmatprep.subr.mxu0 0.0
    %742 = vmatpush1.msra.mxu0 %v730
    %743 = vmatprep.subr.mxu0 0.0
    %744 = vmatpush1.msra.mxu0 %v731
    %745 = vmatprep.subr.mxu0 0.0
    %746 = vmatpush1.msra.mxu0 0.0
    %747 = vmatprep.subr.mxu0 0.0
    %748 = vmatpush1.msra.mxu0 0.0
    %749 = vmatprep.subr.mxu0 0.0
    %750 = vmatpush1.msra.mxu0 0.0
    %751 = vmatprep.subr.mxu0 0.0
    %752 = vmatpush1.msra.mxu0 0.0
    %753 = vmatprep.subr.mxu0 0.0
    %754 = vmatpush1.msra.mxu0 0.0
    %755 = vmatprep.subr.mxu0 0.0
    %756 = vmatpush1.msra.mxu0 0.0
    %757 = vmatprep.subr.mxu0 0.0
    %758 = vmatpush1.msra.mxu0 0.0
    %759 = vmatprep.subr.mxu0 0.0
    %760 = vmatpush1.msra.mxu0 0.0
    %761 = vmatprep.subr.mxu0 0.0
    %762 = vmatpush1.msra.mxu0 0.0
    %763 = vmatprep.subr.mxu0 0.0
    %764 = vmatpush1.msra.mxu0 0.0
    %765 = vmatprep.subr.mxu0 0.0
    %766 = vmatpush1.msra.mxu0 0.0
    %767 = vmatprep.subr.mxu0 0.0
    %768 = vmatpush1.msra.mxu0 0.0
    %769 = vmatprep.subr.mxu0 0.0
    %770 = vmatpush1.msra.mxu0 0.0
    %771 = vmatprep.subr.mxu0 0.0
    %772 = vmatpush1.msra.mxu0 0.0
    %773 = vmatprep.subr.mxu0 0.0
    %774 = vmatpush1.msra.mxu0 0.0
    %775 = vmatprep.subr.mxu0 0.0
    %776 = vmatpush1.msra.mxu0 0.0
    %777 = vmatprep.subr.mxu0 0.0
    %778 = vmatpush1.msra.mxu0 0.0
    %779 = vmatprep.subr.mxu0 0.0
    %780 = vmatpush1.msra.mxu0 0.0
    %781 = vmatprep.subr.mxu0 0.0
    %782 = vmatpush1.msra.mxu0 0.0
    %783 = vmatprep.subr.mxu0 0.0
    %784 = vmatpush1.msra.mxu0 0.0
    %785 = vmatprep.subr.mxu0 0.0
    %786 = vmatpush1.msra.mxu0 0.0
    %787 = vmatprep.subr.mxu0 0.0
    %788 = vmatpush1.msra.mxu0 0.0
    %789 = vmatprep.subr.mxu0 0.0
    %790 = vmatpush1.msra.mxu0 0.0
    %791 = vmatprep.subr.mxu0 0.0
    %792 = vmatpush1.msra.mxu0 0.0
    %793 = vmatprep.subr.mxu0 0.0
    %794 = vmatpush1.msra.mxu0 0.0
    %795 = vmatprep.subr.mxu0 0.0
    %796 = vmatpush1.msra.mxu0 0.0
    %797 = vmatprep.subr.mxu0 0.0
    %798 = vmatpush1.msra.mxu0 0.0
    %799 = vmatprep.subr.mxu0 0.0
    %800 = vmatpush1.msra.mxu0 0.0
    %801 = vmatprep.mubr.f32.mxu0 0.0
    %802 = vmatmul.mubr.f32.gmra.mrb[0].mxu0 %v536
    %v803 = vpop.f32.mrb[0].mxu0
    %v804 = vadd.f32 %v736, %v803
    %v805 = vpop.f32.mrb[0].mxu0
    %806 = vmatprep.mubr.f32.mxu0 0.0
    %807 = vmatmul.mubr.f32.gmra.mrb[0].mxu0 %v539
    %v808 = vpop.f32.mrb[0].mxu0
    %v809 = vadd.f32 %v736, %v808
    %v810 = vpop.f32.mrb[0].mxu0
    %811 = vmatprep.mubr.f32.mxu0 0.0
    %812 = vmatmul.mubr.f32.gmra.mrb[0].mxu0 %v542
    %v813 = vpop.f32.mrb[0].mxu0
    %v814 = vadd.f32 %v736, %v813
    %v815 = vpop.f32.mrb[0].mxu0
    %816 = vmatprep.mubr.f32.mxu0 0.0
    %817 = vmatmul.mubr.f32.gmra.mrb[0].mxu0 %v545
    %v818 = vpop.f32.mrb[0].mxu0
    %v819 = vadd.f32 %v736, %v818
    %v820 = vpop.f32.mrb[0].mxu0
    %821 = vdwg.mxu0
    %s822 = scalar_lea.vmem %s4, 120
    %v823 = vld [vmem:[%s822] sm:$0xff]
    %v824 = vld [vmem:[%s822 + $0x8] sm:$0xff]
    %v825 = vld [vmem:[%s822 + $0x10] sm:$0xff]
    %v826 = vld [vmem:[%s822 + $0x18] sm:$0xff]
    %v827 = vld [vmem:[%s822 + $0x20] sm:$0x1]
    %v828 = vlaneseq
    %v829 = vshrl.u32 %v828, 7
    %v830 = vsub.s32 0, %v829
    %v831 = vrot.slane %v827, %v830
    %832 = vmatprep.subr.mxu0 0.0
    %833 = vmatpush1.msra.mxu0 %v823
    %834 = vmatprep.subr.mxu0 0.0
    %835 = vmatpush1.msra.mxu0 %v824
    %836 = vmatprep.subr.mxu0 0.0
    %837 = vmatpush1.msra.mxu0 %v825
    %838 = vmatprep.subr.mxu0 0.0
    %839 = vmatpush1.msra.mxu0 %v826
    %840 = vmatprep.subr.mxu0 0.0
    %841 = vmatpush1.msra.mxu0 0.0
    %842 = vmatprep.subr.mxu0 0.0
    %843 = vmatpush1.msra.mxu0 0.0
    %844 = vmatprep.subr.mxu0 0.0
    %845 = vmatpush1.msra.mxu0 0.0
    %846 = vmatprep.subr.mxu0 0.0
    %847 = vmatpush1.msra.mxu0 0.0
    %848 = vmatprep.subr.mxu0 0.0
    %849 = vmatpush1.msra.mxu0 0.0
    %850 = vmatprep.subr.mxu0 0.0
    %851 = vmatpush1.msra.mxu0 0.0
    %852 = vmatprep.subr.mxu0 0.0
    %853 = vmatpush1.msra.mxu0 0.0
    %854 = vmatprep.subr.mxu0 0.0
    %855 = vmatpush1.msra.mxu0 0.0
    %856 = vmatprep.subr.mxu0 0.0
    %857 = vmatpush1.msra.mxu0 0.0
    %858 = vmatprep.subr.mxu0 0.0
    %859 = vmatpush1.msra.mxu0 0.0
    %860 = vmatprep.subr.mxu0 0.0
    %861 = vmatpush1.msra.mxu0 0.0
    %862 = vmatprep.subr.mxu0 0.0
    %863 = vmatpush1.msra.mxu0 0.0
    %864 = vmatprep.subr.mxu0 0.0
    %865 = vmatpush1.msra.mxu0 0.0
    %866 = vmatprep.subr.mxu0 0.0
    %867 = vmatpush1.msra.mxu0 0.0
    %868 = vmatprep.subr.mxu0 0.0
    %869 = vmatpush1.msra.mxu0 0.0
    %870 = vmatprep.subr.mxu0 0.0
    %871 = vmatpush1.msra.mxu0 0.0
    %872 = vmatprep.subr.mxu0 0.0
    %873 = vmatpush1.msra.mxu0 0.0
    %874 = vmatprep.subr.mxu0 0.0
    %875 = vmatpush1.msra.mxu0 0.0
    %876 = vmatprep.subr.mxu0 0.0
    %877 = vmatpush1.msra.mxu0 0.0
    %878 = vmatprep.subr.mxu0 0.0
    %879 = vmatpush1.msra.mxu0 0.0
    %880 = vmatprep.subr.mxu0 0.0
    %881 = vmatpush1.msra.mxu0 0.0
    %882 = vmatprep.subr.mxu0 0.0
    %883 = vmatpush1.msra.mxu0 0.0
    %884 = vmatprep.subr.mxu0 0.0
    %885 = vmatpush1.msra.mxu0 0.0
    %886 = vmatprep.subr.mxu0 0.0
    %887 = vmatpush1.msra.mxu0 0.0
    %888 = vmatprep.subr.mxu0 0.0
    %889 = vmatpush1.msra.mxu0 0.0
    %890 = vmatprep.subr.mxu0 0.0
    %891 = vmatpush1.msra.mxu0 0.0
    %892 = vmatprep.subr.mxu0 0.0
    %893 = vmatpush1.msra.mxu0 0.0
    %894 = vmatprep.subr.mxu0 0.0
    %895 = vmatpush1.msra.mxu0 0.0
    %896 = vmatprep.mubr.f32.mxu0 0.0
    %897 = vmatmul.mubr.f32.gmra.mrb[0].mxu0 %v536
    %v898 = vpop.f32.mrb[0].mxu0
    %v899 = vadd.f32 %v831, %v898
    %v900 = vpop.f32.mrb[0].mxu0
    %901 = vmatprep.mubr.f32.mxu0 0.0
    %902 = vmatmul.mubr.f32.gmra.mrb[0].mxu0 %v539
    %v903 = vpop.f32.mrb[0].mxu0
    %v904 = vadd.f32 %v831, %v903
    %v905 = vpop.f32.mrb[0].mxu0
    %906 = vmatprep.mubr.f32.mxu0 0.0
    %907 = vmatmul.mubr.f32.gmra.mrb[0].mxu0 %v542
    %v908 = vpop.f32.mrb[0].mxu0
    %v909 = vadd.f32 %v831, %v908
    %v910 = vpop.f32.mrb[0].mxu0
    %911 = vmatprep.mubr.f32.mxu0 0.0
    %912 = vmatmul.mubr.f32.gmra.mrb[0].mxu0 %v545
    %v913 = vpop.f32.mrb[0].mxu0
    %v914 = vadd.f32 %v831, %v913
    %v915 = vpop.f32.mrb[0].mxu0
    %916 = vdwg.mxu0
    %917 = vmatprep.subr.mxu0 0.0
    %918 = vmatpush1.msra.mxu0 %v614
    %919 = vmatprep.subr.mxu0 0.0
    %920 = vmatpush1.msra.mxu0 %v619
    %921 = vmatprep.subr.mxu0 0.0
    %922 = vmatpush1.msra.mxu0 %v624
    %923 = vmatprep.subr.mxu0 0.0
    %924 = vmatpush1.msra.mxu0 %v629
    %925 = vmatprep.subr.mxu0 0.0
    %926 = vmatpush1.msra.mxu0 %v709
    %927 = vmatprep.subr.mxu0 0.0
    %928 = vmatpush1.msra.mxu0 %v714
    %929 = vmatprep.subr.mxu0 0.0
    %930 = vmatpush1.msra.mxu0 %v719
    %931 = vmatprep.subr.mxu0 0.0
    %932 = vmatpush1.msra.mxu0 %v724
    %933 = vmatprep.subr.mxu0 0.0
    %934 = vmatpush1.msra.mxu0 %v804
    %935 = vmatprep.subr.mxu0 0.0
    %936 = vmatpush1.msra.mxu0 %v809
    %937 = vmatprep.subr.mxu0 0.0
    %938 = vmatpush1.msra.mxu0 %v814
    %939 = vmatprep.subr.mxu0 0.0
    %940 = vmatpush1.msra.mxu0 %v819
    %941 = vmatprep.subr.mxu0 0.0
    %942 = vmatpush1.msra.mxu0 0.0
    %943 = vmatprep.subr.mxu0 0.0
    %944 = vmatpush1.msra.mxu0 0.0
    %945 = vmatprep.subr.mxu0 0.0
    %946 = vmatpush1.msra.mxu0 0.0
    %947 = vmatprep.subr.mxu0 0.0
    %948 = vmatpush1.msra.mxu0 0.0
    %949 = vmatprep.subr.mxu0 0.0
    %950 = vmatpush1.msra.mxu0 0.0
    %951 = vmatprep.subr.mxu0 0.0
    %952 = vmatpush1.msra.mxu0 0.0
    %953 = vmatprep.subr.mxu0 0.0
    %954 = vmatpush1.msra.mxu0 0.0
    %955 = vmatprep.subr.mxu0 0.0
    %956 = vmatpush1.msra.mxu0 0.0
    %957 = vmatprep.subr.mxu0 0.0
    %958 = vmatpush1.msra.mxu0 0.0
    %959 = vmatprep.subr.mxu0 0.0
    %960 = vmatpush1.msra.mxu0 0.0
    %961 = vmatprep.subr.mxu0 0.0
    %962 = vmatpush1.msra.mxu0 0.0
    %963 = vmatprep.subr.mxu0 0.0
    %964 = vmatpush1.msra.mxu0 0.0
    %965 = vmatprep.subr.mxu0 0.0
    %966 = vmatpush1.msra.mxu0 0.0
    %967 = vmatprep.subr.mxu0 0.0
    %968 = vmatpush1.msra.mxu0 0.0
    %969 = vmatprep.subr.mxu0 0.0
    %970 = vmatpush1.msra.mxu0 0.0
    %971 = vmatprep.subr.mxu0 0.0
    %972 = vmatpush1.msra.mxu0 0.0
    %973 = vmatprep.subr.mxu0 0.0
    %974 = vmatpush1.msra.mxu0 0.0
    %975 = vmatprep.subr.mxu0 0.0
    %976 = vmatpush1.msra.mxu0 0.0
    %977 = vmatprep.subr.mxu0 0.0
    %978 = vmatpush1.msra.mxu0 0.0
    %979 = vmatprep.subr.mxu0 0.0
    %980 = vmatpush1.msra.mxu0 0.0
    %981 = vmatprep.mubr.f32.mxu0 0.0
    %982 = vmatmul.mubr.f32.gmra.mrb[0].mxu0 %v425
    %v983 = vpop.f32.mrb[0].mxu0
    %v984 = vadd.f32 %v899, %v983
    %v985 = vpop.f32.mrb[0].mxu0
    %986 = vmatprep.mubr.f32.mxu0 0.0
    %987 = vmatmul.mubr.f32.gmra.mrb[0].mxu0 %v428
    %v988 = vpop.f32.mrb[0].mxu0
    %v989 = vadd.f32 %v904, %v988
    %v990 = vpop.f32.mrb[0].mxu0
    %991 = vmatprep.mubr.f32.mxu0 0.0
    %992 = vmatmul.mubr.f32.gmra.mrb[0].mxu0 %v431
    %v993 = vpop.f32.mrb[0].mxu0
    %v994 = vadd.f32 %v909, %v993
    %v995 = vpop.f32.mrb[0].mxu0
    %996 = vmatprep.mubr.f32.mxu0 0.0
    %997 = vmatmul.mubr.f32.gmra.mrb[0].mxu0 %v434
    %v998 = vpop.f32.mrb[0].mxu0
    %v999 = vadd.f32 %v914, %v998
    %v1000 = vpop.f32.mrb[0].mxu0
    %1001 = vdwg.mxu0
    %v1002 = vtanh.pop %v984
    %v1003 = vtanh.pop %v989
    %v1004 = vtanh.pop %v994
    %v1005 = vtanh.pop %v999
    %v1006 = vld [vmem:[%s5] sm:$0xff]
    %v1007 = vld [vmem:[%s5 + $0x8] sm:$0xff]
    %v1008 = vld [vmem:[%s5 + $0x10] sm:$0xff]
    %v1009 = vld [vmem:[%s5 + $0x18] sm:$0xff]
    %v1010 = vld [vmem:[%s5 + $0x20] sm:$0xff]
    %v1011 = vld [vmem:[%s5 + $0x28] sm:$0xff]
    %v1012 = vld [vmem:[%s5 + $0x30] sm:$0xff]
    %v1013 = vld [vmem:[%s5 + $0x38] sm:$0xff]
    %v1014 = vld [vmem:[%s5 + $0x40] sm:$0xff]
    %v1015 = vld [vmem:[%s5 + $0x48] sm:$0xff]
    %v1016 = vld [vmem:[%s5 + $0x50] sm:$0xff]
    %v1017 = vld [vmem:[%s5 + $0x58] sm:$0xff]
    %v1018 = vld [vmem:[%s5 + $0x60] sm:$0xff]
    %v1019 = vld [vmem:[%s5 + $0x68] sm:$0xff]
    %v1020 = vld [vmem:[%s5 + $0x70] sm:$0xff]
    %v1021 = vld [vmem:[%s5 + $0x78] sm:$0xff]
    %v1022 = vld [vmem:[%s5 + $0x80] sm:$0xff]
    %v1023 = vld [vmem:[%s5 + $0x88] sm:$0xff]
    %1024 = vmatprep.subr.mxu0 %v1023
    %1025 = vmatpush1.msra.mxu0 %v1022
    %1026 = vmatprep.subr.mxu0 0.0
    %1027 = vmatpush1.msra.mxu0 0.0
    %1028 = vmatprep.subr.mxu0 0.0
    %1029 = vmatpush1.msra.mxu0 0.0
    %1030 = vmatprep.subr.mxu0 0.0
    %1031 = vmatpush1.msra.mxu0 0.0
    %1032 = vmatprep.subr.mxu0 0.0
    %1033 = vmatpush1.msra.mxu0 0.0
    %1034 = vmatprep.subr.mxu0 0.0
    %1035 = vmatpush1.msra.mxu0 0.0
    %1036 = vmatprep.subr.mxu0 0.0
    %1037 = vmatpush1.msra.mxu0 0.0
    %1038 = vmatprep.subr.mxu0 0.0
    %1039 = vmatpush1.msra.mxu0 0.0
    %1040 = vmatprep.subr.mxu0 0.0
    %1041 = vmatpush1.msra.mxu0 0.0
    %1042 = vmatprep.subr.mxu0 0.0
    %1043 = vmatpush1.msra.mxu0 0.0
    %1044 = vmatprep.subr.mxu0 0.0
    %1045 = vmatpush1.msra.mxu0 0.0
    %1046 = vmatprep.subr.mxu0 0.0
    %1047 = vmatpush1.msra.mxu0 0.0
    %1048 = vmatprep.subr.mxu0 0.0
    %1049 = vmatpush1.msra.mxu0 0.0
    %1050 = vmatprep.subr.mxu0 0.0
    %1051 = vmatpush1.msra.mxu0 0.0
    %1052 = vmatprep.subr.mxu0 0.0
    %1053 = vmatpush1.msra.mxu0 0.0
    %1054 = vmatprep.subr.mxu0 0.0
    %1055 = vmatpush1.msra.mxu0 0.0
    %1056 = vmatprep.subr.mxu0 0.0
    %1057 = vmatpush1.msra.mxu0 0.0
    %1058 = vmatprep.subr.mxu0 0.0
    %1059 = vmatpush1.msra.mxu0 0.0
    %1060 = vmatprep.subr.mxu0 0.0
    %1061 = vmatpush1.msra.mxu0 0.0
    %1062 = vmatprep.subr.mxu0 0.0
    %1063 = vmatpush1.msra.mxu0 0.0
    %1064 = vmatprep.subr.mxu0 0.0
    %1065 = vmatpush1.msra.mxu0 0.0
    %1066 = vmatprep.subr.mxu0 0.0
    %1067 = vmatpush1.msra.mxu0 0.0
    %1068 = vmatprep.subr.mxu0 0.0
    %1069 = vmatpush1.msra.mxu0 0.0
    %1070 = vmatprep.subr.mxu0 0.0
    %1071 = vmatpush1.msra.mxu0 0.0
    %1072 = vmatprep.subr.mxu0 0.0
    %1073 = vmatpush1.msra.mxu0 0.0
    %1074 = vmatprep.subr.mxu0 0.0
    %1075 = vmatpush1.msra.mxu0 0.0
    %1076 = vmatprep.subr.mxu0 0.0
    %1077 = vmatpush1.msra.mxu0 0.0
    %1078 = vmatprep.subr.mxu0 0.0
    %1079 = vmatpush1.msra.mxu0 0.0
    %1080 = vmatprep.subr.mxu0 0.0
    %1081 = vmatpush1.msra.mxu0 0.0
    %1082 = vmatprep.subr.mxu0 0.0
    %1083 = vmatpush1.msra.mxu0 0.0
    %1084 = vmatprep.subr.mxu0 0.0
    %1085 = vmatpush1.msra.mxu0 0.0
    %1086 = vmatprep.subr.mxu0 0.0
    %1087 = vmatpush1.msra.mxu0 0.0
    %1088 = vmatprep.mubr.f32.mxu0 0.0
    %1089 = vmatmul.mubr.f32.gmra.mrb[0].mxu0 %v51
    %v1090 = vpop.f32.mrb[0].mxu0
    %v1091 = vadd.f32 0.0, %v1090
    %v1092 = vpop.f32.mrb[0].mxu0
    %v1093 = vadd.f32 0.0, %v1092
    %1094 = vmatprep.mubr.f32.mxu0 0.0
    %1095 = vmatmul.mubr.f32.gmra.mrb[0].mxu0 %v54
    %v1096 = vpop.f32.mrb[0].mxu0
    %v1097 = vadd.f32 0.0, %v1096
    %v1098 = vpop.f32.mrb[0].mxu0
    %v1099 = vadd.f32 0.0, %v1098
    %1100 = vmatprep.mubr.f32.mxu0 0.0
    %1101 = vmatmul.mubr.f32.gmra.mrb[0].mxu0 %v57
    %v1102 = vpop.f32.mrb[0].mxu0
    %v1103 = vadd.f32 0.0, %v1102
    %v1104 = vpop.f32.mrb[0].mxu0
    %v1105 = vadd.f32 0.0, %v1104
    %1106 = vmatprep.mubr.f32.mxu0 0.0
    %1107 = vmatmul.mubr.f32.gmra.mrb[0].mxu0 %v60
    %v1108 = vpop.f32.mrb[0].mxu0
    %v1109 = vadd.f32 0.0, %v1108
    %v1110 = vpop.f32.mrb[0].mxu0
    %v1111 = vadd.f32 0.0, %v1110
    %1112 = vdwg.mxu0
    %vm1113 = vcmask 523264
    %v1115 = vsel %vm1113, %v1002, 0
    %v1118 = vsel %vm1113, %v1003, 0
    %v1121 = vsel %vm1113, %v1004, 0
    %v1124 = vsel %vm1113, %v1005, 0
    %1126 = vmatprep.subr.mxu0 %v1007
    %1127 = vmatpush1.msra.mxu0 %v1006
    %1128 = vmatprep.subr.mxu0 %v1009
    %1129 = vmatpush1.msra.mxu0 %v1008
    %1130 = vmatprep.subr.mxu0 %v1011
    %1131 = vmatpush1.msra.mxu0 %v1010
    %1132 = vmatprep.subr.mxu0 %v1013
    %1133 = vmatpush1.msra.mxu0 %v1012
    %1134 = vmatprep.subr.mxu0 %v1015
    %1135 = vmatpush1.msra.mxu0 %v1014
    %1136 = vmatprep.subr.mxu0 %v1017
    %1137 = vmatpush1.msra.mxu0 %v1016
    %1138 = vmatprep.subr.mxu0 %v1019
    %1139 = vmatpush1.msra.mxu0 %v1018
    %1140 = vmatprep.subr.mxu0 %v1021
    %1141 = vmatpush1.msra.mxu0 %v1020
    %1142 = vmatprep.subr.mxu0 0.0
    %1143 = vmatpush1.msra.mxu0 0.0
    %1144 = vmatprep.subr.mxu0 0.0
    %1145 = vmatpush1.msra.mxu0 0.0
    %1146 = vmatprep.subr.mxu0 0.0
    %1147 = vmatpush1.msra.mxu0 0.0
    %1148 = vmatprep.subr.mxu0 0.0
    %1149 = vmatpush1.msra.mxu0 0.0
    %1150 = vmatprep.subr.mxu0 0.0
    %1151 = vmatpush1.msra.mxu0 0.0
    %1152 = vmatprep.subr.mxu0 0.0
    %1153 = vmatpush1.msra.mxu0 0.0
    %1154 = vmatprep.subr.mxu0 0.0
    %1155 = vmatpush1.msra.mxu0 0.0
    %1156 = vmatprep.subr.mxu0 0.0
    %1157 = vmatpush1.msra.mxu0 0.0
    %1158 = vmatprep.subr.mxu0 0.0
    %1159 = vmatpush1.msra.mxu0 0.0
    %1160 = vmatprep.subr.mxu0 0.0
    %1161 = vmatpush1.msra.mxu0 0.0
    %1162 = vmatprep.subr.mxu0 0.0
    %1163 = vmatpush1.msra.mxu0 0.0
    %1164 = vmatprep.subr.mxu0 0.0
    %1165 = vmatpush1.msra.mxu0 0.0
    %1166 = vmatprep.subr.mxu0 0.0
    %1167 = vmatpush1.msra.mxu0 0.0
    %1168 = vmatprep.subr.mxu0 0.0
    %1169 = vmatpush1.msra.mxu0 0.0
    %1170 = vmatprep.subr.mxu0 0.0
    %1171 = vmatpush1.msra.mxu0 0.0
    %1172 = vmatprep.subr.mxu0 0.0
    %1173 = vmatpush1.msra.mxu0 0.0
    %1174 = vmatprep.subr.mxu0 0.0
    %1175 = vmatpush1.msra.mxu0 0.0
    %1176 = vmatprep.subr.mxu0 0.0
    %1177 = vmatpush1.msra.mxu0 0.0
    %1178 = vmatprep.subr.mxu0 0.0
    %1179 = vmatpush1.msra.mxu0 0.0
    %1180 = vmatprep.subr.mxu0 0.0
    %1181 = vmatpush1.msra.mxu0 0.0
    %1182 = vmatprep.subr.mxu0 0.0
    %1183 = vmatpush1.msra.mxu0 0.0
    %1184 = vmatprep.subr.mxu0 0.0
    %1185 = vmatpush1.msra.mxu0 0.0
    %1186 = vmatprep.subr.mxu0 0.0
    %1187 = vmatpush1.msra.mxu0 0.0
    %1188 = vmatprep.subr.mxu0 0.0
    %1189 = vmatpush1.msra.mxu0 0.0
    %1190 = vmatprep.mubr.f32.mxu0 0.0
    %1191 = vmatmul.mubr.f32.gmra.mrb[0].mxu0 %v1115
    %v1192 = vpop.f32.mrb[0].mxu0
    %v1193 = vadd.f32 %v1091, %v1192
    %v1194 = vpop.f32.mrb[0].mxu0
    %v1195 = vadd.f32 %v1093, %v1194
    %1196 = vmatprep.mubr.f32.mxu0 0.0
    %1197 = vmatmul.mubr.f32.gmra.mrb[0].mxu0 %v1118
    %v1198 = vpop.f32.mrb[0].mxu0
    %v1199 = vadd.f32 %v1097, %v1198
    %v1200 = vpop.f32.mrb[0].mxu0
    %v1201 = vadd.f32 %v1099, %v1200
    %1202 = vmatprep.mubr.f32.mxu0 0.0
    %1203 = vmatmul.mubr.f32.gmra.mrb[0].mxu0 %v1121
    %v1204 = vpop.f32.mrb[0].mxu0
    %v1205 = vadd.f32 %v1103, %v1204
    %v1206 = vpop.f32.mrb[0].mxu0
    %v1207 = vadd.f32 %v1105, %v1206
    %1208 = vmatprep.mubr.f32.mxu0 0.0
    %1209 = vmatmul.mubr.f32.gmra.mrb[0].mxu0 %v1124
    %v1210 = vpop.f32.mrb[0].mxu0
    %v1211 = vadd.f32 %v1109, %v1210
    %v1212 = vpop.f32.mrb[0].mxu0
    %v1213 = vadd.f32 %v1111, %v1212
    %1214 = vdwg.mxu0
    %s1215 = scalar_lea.vmem %s5, 144
    %v1216 = vld [vmem:[%s1215] ss:$8 sm:$0x3]
    %v1218 = vlaneseq
    %v1219 = vshrl.u32 %v1218, 7
    %v1220 = vsub.s32 0, %v1219
    %v1221 = vrot.slane %v1216, %v1220
    %v1222 = vlaneseq
    %v1223 = vshrl.u32 %v1222, 7
    %v1224 = vsub.s32 1, %v1223
    %v1225 = vrot.slane %v1216, %v1224
    %v1228 = vadd.f32 %v1193, %v1221
    %v1229 = vadd.f32 %v1195, %v1225
    %v1230 = vadd.f32 %v1199, %v1221
    %v1231 = vadd.f32 %v1201, %v1225
    %v1232 = vadd.f32 %v1205, %v1221
    %v1233 = vadd.f32 %v1207, %v1225
    %v1234 = vadd.f32 %v1211, %v1221
    %v1235 = vadd.f32 %v1213, %v1225
    %v1236 = vxor.u32 %v1228, 2147483648
    %v1237 = vxor.u32 %v1230, 2147483648
    %v1238 = vxor.u32 %v1232, 2147483648
    %v1239 = vxor.u32 %v1234, 2147483648
    %v1240 = vmul.f32 %v1236, 1.442695
    %v1241 = vpow.pop %v1240
    %v1242 = vmul.f32 %v1237, 1.442695
    %v1243 = vpow.pop %v1242
    %v1244 = vmul.f32 %v1238, 1.442695
    %v1245 = vpow.pop %v1244
    %v1246 = vmul.f32 %v1239, 1.442695
    %v1247 = vpow.pop %v1246
    %v1248 = vadd.f32 %v1241, 1.0
    %v1249 = vadd.f32 %v1243, 1.0
    %v1250 = vadd.f32 %v1245, 1.0
    %v1251 = vadd.f32 %v1247, 1.0
    %v1252 = vrcp.pop %v1248
    %v1253 = vmul.f32 1.0, %v1252
    %v1254 = vrcp.pop %v1249
    %v1255 = vmul.f32 1.0, %v1254
    %v1256 = vrcp.pop %v1250
    %v1257 = vmul.f32 1.0, %v1256
    %v1258 = vrcp.pop %v1251
    %v1259 = vmul.f32 1.0, %v1258
    %v1260 = vtanh.pop %v1229
    %v1261 = vtanh.pop %v1231
    %v1262 = vtanh.pop %v1233
    %v1263 = vtanh.pop %v1235
    %v1264 = vmul.f32 %v1253, %v1260
    %v1265 = vmul.f32 %v1255, %v1261
    %v1266 = vmul.f32 %v1257, %v1262
    %v1267 = vmul.f32 %v1259, %v1263
    %v1268 = vld [vmem:[%s2] sm:$0x3]
    %v1270 = vsel %vm534, %v1268, 0
    %1272 = vmatprep.subr.mxu0 0.0
    %1273 = vmatpush1.msra.mxu0 %v1264
    %1274 = vmatprep.subr.mxu0 0.0
    %1275 = vmatpush1.msra.mxu0 %v1265
    %1276 = vmatprep.subr.mxu0 0.0
    %1277 = vmatpush1.msra.mxu0 %v1266
    %1278 = vmatprep.subr.mxu0 0.0
    %1279 = vmatpush1.msra.mxu0 %v1267
    %1280 = vmatprep.subr.mxu0 0.0
    %1281 = vmatpush1.msra.mxu0 0.0
    %1282 = vmatprep.subr.mxu0 0.0
    %1283 = vmatpush1.msra.mxu0 0.0
    %1284 = vmatprep.subr.mxu0 0.0
    %1285 = vmatpush1.msra.mxu0 0.0
    %1286 = vmatprep.subr.mxu0 0.0
    %1287 = vmatpush1.msra.mxu0 0.0
    %1288 = vmatprep.subr.mxu0 0.0
    %1289 = vmatpush1.msra.mxu0 0.0
    %1290 = vmatprep.subr.mxu0 0.0
    %1291 = vmatpush1.msra.mxu0 0.0
    %1292 = vmatprep.subr.mxu0 0.0
    %1293 = vmatpush1.msra.mxu0 0.0
    %1294 = vmatprep.subr.mxu0 0.0
    %1295 = vmatpush1.msra.mxu0 0.0
    %1296 = vmatprep.subr.mxu0 0.0
    %1297 = vmatpush1.msra.mxu0 0.0
    %1298 = vmatprep.subr.mxu0 0.0
    %1299 = vmatpush1.msra.mxu0 0.0
    %1300 = vmatprep.subr.mxu0 0.0
    %1301 = vmatpush1.msra.mxu0 0.0
    %1302 = vmatprep.subr.mxu0 0.0
    %1303 = vmatpush1.msra.mxu0 0.0
    %1304 = vmatprep.subr.mxu0 0.0
    %1305 = vmatpush1.msra.mxu0 0.0
    %1306 = vmatprep.subr.mxu0 0.0
    %1307 = vmatpush1.msra.mxu0 0.0
    %1308 = vmatprep.subr.mxu0 0.0
    %1309 = vmatpush1.msra.mxu0 0.0
    %1310 = vmatprep.subr.mxu0 0.0
    %1311 = vmatpush1.msra.mxu0 0.0
    %1312 = vmatprep.subr.mxu0 0.0
    %1313 = vmatpush1.msra.mxu0 0.0
    %1314 = vmatprep.subr.mxu0 0.0
    %1315 = vmatpush1.msra.mxu0 0.0
    %1316 = vmatprep.subr.mxu0 0.0
    %1317 = vmatpush1.msra.mxu0 0.0
    %1318 = vmatprep.subr.mxu0 0.0
    %1319 = vmatpush1.msra.mxu0 0.0
    %1320 = vmatprep.subr.mxu0 0.0
    %1321 = vmatpush1.msra.mxu0 0.0
    %1322 = vmatprep.subr.mxu0 0.0
    %1323 = vmatpush1.msra.mxu0 0.0
    %1324 = vmatprep.subr.mxu0 0.0
    %1325 = vmatpush1.msra.mxu0 0.0
    %1326 = vmatprep.subr.mxu0 0.0
    %1327 = vmatpush1.msra.mxu0 0.0
    %1328 = vmatprep.subr.mxu0 0.0
    %1329 = vmatpush1.msra.mxu0 0.0
    %1330 = vmatprep.subr.mxu0 0.0
    %1331 = vmatpush1.msra.mxu0 0.0
    %1332 = vmatprep.subr.mxu0 0.0
    %1333 = vmatpush1.msra.mxu0 0.0
    %1334 = vmatprep.subr.mxu0 0.0
    %1335 = vmatpush1.msra.mxu0 0.0
    %1336 = vmatprep.mubr.f32.mxu0 0.0
    %1337 = vmatmul.mubr.f32.gmra.mrb[0].mxu0 %v1270
    %v1338 = vpop.f32.mrb[0].mxu0
    %v1339 = vadd.f32 0.0, %v1338
    %v1340 = vpop.f32.mrb[0].mxu0
    %1341 = vdwg.mxu0
    %v1342 = vtanh.pop %v1339
    %v1343 = vld [vmem:[%s6] sm:$0xff]
    %v1344 = vld [vmem:[%s6 + $0x8] sm:$0xff]
    %v1345 = vld [vmem:[%s6 + $0x10] sm:$0xff]
    %v1346 = vld [vmem:[%s6 + $0x18] sm:$0xff]
    %v1347 = vld [vmem:[%s6 + $0x20] sm:$0xff]
    %v1348 = vld [vmem:[%s6 + $0x28] sm:$0xff]
    %v1349 = vld [vmem:[%s6 + $0x30] sm:$0xff]
    %v1350 = vld [vmem:[%s6 + $0x38] sm:$0xff]
    %v1351 = vld [vmem:[%s6 + $0x40] sm:$0xff]
    %v1352 = vld [vmem:[%s6 + $0x48] sm:$0xff]
    %v1353 = vld [vmem:[%s6 + $0x50] sm:$0xff]
    %v1354 = vld [vmem:[%s6 + $0x58] sm:$0xff]
    %v1355 = vld [vmem:[%s6 + $0x60] sm:$0xff]
    %v1356 = vld [vmem:[%s6 + $0x68] sm:$0xff]
    %v1357 = vld [vmem:[%s6 + $0x70] sm:$0xff]
    %v1358 = vld [vmem:[%s6 + $0x78] sm:$0xff]
    %v1359 = vld [vmem:[%s6 + $0x80] sm:$0x1]
    %v1360 = vlaneseq
    %v1361 = vshrl.u32 %v1360, 7
    %v1362 = vsub.s32 0, %v1361
    %v1363 = vrot.slane %v1359, %v1362
    %1364 = vmatprep.subr.mxu0 0.0
    %1365 = vmatpush1.msra.mxu0 %v1343
    %1366 = vmatprep.subr.mxu0 0.0
    %1367 = vmatpush1.msra.mxu0 %v1344
    %1368 = vmatprep.subr.mxu0 0.0
    %1369 = vmatpush1.msra.mxu0 %v1345
    %1370 = vmatprep.subr.mxu0 0.0
    %1371 = vmatpush1.msra.mxu0 %v1346
    %1372 = vmatprep.subr.mxu0 0.0
    %1373 = vmatpush1.msra.mxu0 %v1347
    %1374 = vmatprep.subr.mxu0 0.0
    %1375 = vmatpush1.msra.mxu0 %v1348
    %1376 = vmatprep.subr.mxu0 0.0
    %1377 = vmatpush1.msra.mxu0 %v1349
    %1378 = vmatprep.subr.mxu0 0.0
    %1379 = vmatpush1.msra.mxu0 %v1350
    %1380 = vmatprep.subr.mxu0 0.0
    %1381 = vmatpush1.msra.mxu0 %v1351
    %1382 = vmatprep.subr.mxu0 0.0
    %1383 = vmatpush1.msra.mxu0 %v1352
    %1384 = vmatprep.subr.mxu0 0.0
    %1385 = vmatpush1.msra.mxu0 %v1353
    %1386 = vmatprep.subr.mxu0 0.0
    %1387 = vmatpush1.msra.mxu0 %v1354
    %1388 = vmatprep.subr.mxu0 0.0
    %1389 = vmatpush1.msra.mxu0 %v1355
    %1390 = vmatprep.subr.mxu0 0.0
    %1391 = vmatpush1.msra.mxu0 %v1356
    %1392 = vmatprep.subr.mxu0 0.0
    %1393 = vmatpush1.msra.mxu0 %v1357
    %1394 = vmatprep.subr.mxu0 0.0
    %1395 = vmatpush1.msra.mxu0 %v1358
    %1396 = vmatprep.subr.mxu0 0.0
    %1397 = vmatpush1.msra.mxu0 0.0
    %1398 = vmatprep.subr.mxu0 0.0
    %1399 = vmatpush1.msra.mxu0 0.0
    %1400 = vmatprep.subr.mxu0 0.0
    %1401 = vmatpush1.msra.mxu0 0.0
    %1402 = vmatprep.subr.mxu0 0.0
    %1403 = vmatpush1.msra.mxu0 0.0
    %1404 = vmatprep.subr.mxu0 0.0
    %1405 = vmatpush1.msra.mxu0 0.0
    %1406 = vmatprep.subr.mxu0 0.0
    %1407 = vmatpush1.msra.mxu0 0.0
    %1408 = vmatprep.subr.mxu0 0.0
    %1409 = vmatpush1.msra.mxu0 0.0
    %1410 = vmatprep.subr.mxu0 0.0
    %1411 = vmatpush1.msra.mxu0 0.0
    %1412 = vmatprep.subr.mxu0 0.0
    %1413 = vmatpush1.msra.mxu0 0.0
    %1414 = vmatprep.subr.mxu0 0.0
    %1415 = vmatpush1.msra.mxu0 0.0
    %1416 = vmatprep.subr.mxu0 0.0
    %1417 = vmatpush1.msra.mxu0 0.0
    %1418 = vmatprep.subr.mxu0 0.0
    %1419 = vmatpush1.msra.mxu0 0.0
    %1420 = vmatprep.subr.mxu0 0.0
    %1421 = vmatpush1.msra.mxu0 0.0
    %1422 = vmatprep.subr.mxu0 0.0
    %1423 = vmatpush1.msra.mxu0 0.0
    %1424 = vmatprep.subr.mxu0 0.0
    %1425 = vmatpush1.msra.mxu0 0.0
    %1426 = vmatprep.subr.mxu0 0.0
    %1427 = vmatpush1.msra.mxu0 0.0
    %1428 = vmatprep.mubr.f32.mxu0 0.0
    %1429 = vmatmul.mubr.f32.gmra.mrb[0].mxu0 %v1342
    %v1430 = vpop.f32.mrb[0].mxu0
    %v1431 = vadd.f32 %v1363, %v1430
    %v1432 = vpop.f32.mrb[0].mxu0
    %1433 = vdwg.mxu0
    %v1434 = vtanh.pop %v1431
    %v1435 = vld [vmem:[%s7] sm:$0xff]
    %v1436 = vld [vmem:[%s7 + $0x8] sm:$0xff]
    %v1437 = vld [vmem:[%s7 + $0x10] sm:$0xff]
    %v1438 = vld [vmem:[%s7 + $0x18] sm:$0xff]
    %v1439 = vld [vmem:[%s7 + $0x20] sm:$0xff]
    %v1440 = vld [vmem:[%s7 + $0x28] sm:$0xff]
    %v1441 = vld [vmem:[%s7 + $0x30] sm:$0xff]
    %v1442 = vld [vmem:[%s7 + $0x38] sm:$0xff]
    %v1443 = vld [vmem:[%s7 + $0x40] sm:$0xff]
    %v1444 = vld [vmem:[%s7 + $0x48] sm:$0xff]
    %v1445 = vld [vmem:[%s7 + $0x50] sm:$0xff]
    %v1446 = vld [vmem:[%s7 + $0x58] sm:$0xff]
    %v1447 = vld [vmem:[%s7 + $0x60] sm:$0xff]
    %v1448 = vld [vmem:[%s7 + $0x68] sm:$0xff]
    %v1449 = vld [vmem:[%s7 + $0x70] sm:$0xff]
    %v1450 = vld [vmem:[%s7 + $0x78] sm:$0xff]
    %v1451 = vld [vmem:[%s7 + $0x80] sm:$0x1]
    %v1452 = vlaneseq
    %v1453 = vshrl.u32 %v1452, 7
    %v1454 = vsub.s32 0, %v1453
    %v1455 = vrot.slane %v1451, %v1454
    %1456 = vmatprep.subr.mxu0 0.0
    %1457 = vmatpush1.msra.mxu0 %v1435
    %1458 = vmatprep.subr.mxu0 0.0
    %1459 = vmatpush1.msra.mxu0 %v1436
    %1460 = vmatprep.subr.mxu0 0.0
    %1461 = vmatpush1.msra.mxu0 %v1437
    %1462 = vmatprep.subr.mxu0 0.0
    %1463 = vmatpush1.msra.mxu0 %v1438
    %1464 = vmatprep.subr.mxu0 0.0
    %1465 = vmatpush1.msra.mxu0 %v1439
    %1466 = vmatprep.subr.mxu0 0.0
    %1467 = vmatpush1.msra.mxu0 %v1440
    %1468 = vmatprep.subr.mxu0 0.0
    %1469 = vmatpush1.msra.mxu0 %v1441
    %1470 = vmatprep.subr.mxu0 0.0
    %1471 = vmatpush1.msra.mxu0 %v1442
    %1472 = vmatprep.subr.mxu0 0.0
    %1473 = vmatpush1.msra.mxu0 %v1443
    %1474 = vmatprep.subr.mxu0 0.0
    %1475 = vmatpush1.msra.mxu0 %v1444
    %1476 = vmatprep.subr.mxu0 0.0
    %1477 = vmatpush1.msra.mxu0 %v1445
    %1478 = vmatprep.subr.mxu0 0.0
    %1479 = vmatpush1.msra.mxu0 %v1446
    %1480 = vmatprep.subr.mxu0 0.0
    %1481 = vmatpush1.msra.mxu0 %v1447
    %1482 = vmatprep.subr.mxu0 0.0
    %1483 = vmatpush1.msra.mxu0 %v1448
    %1484 = vmatprep.subr.mxu0 0.0
    %1485 = vmatpush1.msra.mxu0 %v1449
    %1486 = vmatprep.subr.mxu0 0.0
    %1487 = vmatpush1.msra.mxu0 %v1450
    %1488 = vmatprep.subr.mxu0 0.0
    %1489 = vmatpush1.msra.mxu0 0.0
    %1490 = vmatprep.subr.mxu0 0.0
    %1491 = vmatpush1.msra.mxu0 0.0
    %1492 = vmatprep.subr.mxu0 0.0
    %1493 = vmatpush1.msra.mxu0 0.0
    %1494 = vmatprep.subr.mxu0 0.0
    %1495 = vmatpush1.msra.mxu0 0.0
    %1496 = vmatprep.subr.mxu0 0.0
    %1497 = vmatpush1.msra.mxu0 0.0
    %1498 = vmatprep.subr.mxu0 0.0
    %1499 = vmatpush1.msra.mxu0 0.0
    %1500 = vmatprep.subr.mxu0 0.0
    %1501 = vmatpush1.msra.mxu0 0.0
    %1502 = vmatprep.subr.mxu0 0.0
    %1503 = vmatpush1.msra.mxu0 0.0
    %1504 = vmatprep.subr.mxu0 0.0
    %1505 = vmatpush1.msra.mxu0 0.0
    %1506 = vmatprep.subr.mxu0 0.0
    %1507 = vmatpush1.msra.mxu0 0.0
    %1508 = vmatprep.subr.mxu0 0.0
    %1509 = vmatpush1.msra.mxu0 0.0
    %1510 = vmatprep.subr.mxu0 0.0
    %1511 = vmatpush1.msra.mxu0 0.0
    %1512 = vmatprep.subr.mxu0 0.0
    %1513 = vmatpush1.msra.mxu0 0.0
    %1514 = vmatprep.subr.mxu0 0.0
    %1515 = vmatpush1.msra.mxu0 0.0
    %1516 = vmatprep.subr.mxu0 0.0
    %1517 = vmatpush1.msra.mxu0 0.0
    %1518 = vmatprep.subr.mxu0 0.0
    %1519 = vmatpush1.msra.mxu0 0.0
    %1520 = vmatprep.mubr.f32.mxu0 0.0
    %1521 = vmatmul.mubr.f32.gmra.mrb[0].mxu0 %v1434
    %v1522 = vpop.f32.mrb[0].mxu0
    %v1523 = vadd.f32 %v1455, %v1522
    %v1524 = vpop.f32.mrb[0].mxu0
    %1525 = vdwg.mxu0
    %v1526 = vtanh.pop %v1523
    %vm1527 = vcmask 517120
    %1528 = vst.msk [vmem:[#allocation2] sm:$0x3] %vm1527, %v1526
    %v1529 = vld [vmem:[%s8] sm:$0xff]
    %v1530 = vld [vmem:[%s8 + $0x8] sm:$0xff]
    %v1531 = vld [vmem:[%s8 + $0x10] sm:$0xff]
    %v1532 = vld [vmem:[%s8 + $0x18] sm:$0xff]
    %v1533 = vld [vmem:[%s8 + $0x20] sm:$0xff]
    %v1534 = vld [vmem:[%s8 + $0x28] sm:$0xff]
    %v1535 = vld [vmem:[%s8 + $0x30] sm:$0xff]
    %v1536 = vld [vmem:[%s8 + $0x38] sm:$0xff]
    %v1537 = vld [vmem:[%s8 + $0x40] sm:$0x1]
    %v1538 = vlaneseq
    %v1539 = vshrl.u32 %v1538, 7
    %v1540 = vsub.s32 0, %v1539
    %v1541 = vrot.slane %v1537, %v1540
    %v1543 = vsel %vm1113, %v1526, 0
    %1545 = vmatprep.subr.mxu0 0.0
    %1546 = vmatpush1.msra.mxu0 %v1529
    %1547 = vmatprep.subr.mxu0 0.0
    %1548 = vmatpush1.msra.mxu0 %v1530
    %1549 = vmatprep.subr.mxu0 0.0
    %1550 = vmatpush1.msra.mxu0 %v1531
    %1551 = vmatprep.subr.mxu0 0.0
    %1552 = vmatpush1.msra.mxu0 %v1532
    %1553 = vmatprep.subr.mxu0 0.0
    %1554 = vmatpush1.msra.mxu0 %v1533
    %1555 = vmatprep.subr.mxu0 0.0
    %1556 = vmatpush1.msra.mxu0 %v1534
    %1557 = vmatprep.subr.mxu0 0.0
    %1558 = vmatpush1.msra.mxu0 %v1535
    %1559 = vmatprep.subr.mxu0 0.0
    %1560 = vmatpush1.msra.mxu0 %v1536
    %1561 = vmatprep.subr.mxu0 0.0
    %1562 = vmatpush1.msra.mxu0 0.0
    %1563 = vmatprep.subr.mxu0 0.0
    %1564 = vmatpush1.msra.mxu0 0.0
    %1565 = vmatprep.subr.mxu0 0.0
    %1566 = vmatpush1.msra.mxu0 0.0
    %1567 = vmatprep.subr.mxu0 0.0
    %1568 = vmatpush1.msra.mxu0 0.0
    %1569 = vmatprep.subr.mxu0 0.0
    %1570 = vmatpush1.msra.mxu0 0.0
    %1571 = vmatprep.subr.mxu0 0.0
    %1572 = vmatpush1.msra.mxu0 0.0
    %1573 = vmatprep.subr.mxu0 0.0
    %1574 = vmatpush1.msra.mxu0 0.0
    %1575 = vmatprep.subr.mxu0 0.0
    %1576 = vmatpush1.msra.mxu0 0.0
    %1577 = vmatprep.subr.mxu0 0.0
    %1578 = vmatpush1.msra.mxu0 0.0
    %1579 = vmatprep.subr.mxu0 0.0
    %1580 = vmatpush1.msra.mxu0 0.0
    %1581 = vmatprep.subr.mxu0 0.0
    %1582 = vmatpush1.msra.mxu0 0.0
    %1583 = vmatprep.subr.mxu0 0.0
    %1584 = vmatpush1.msra.mxu0 0.0
    %1585 = vmatprep.subr.mxu0 0.0
    %1586 = vmatpush1.msra.mxu0 0.0
    %1587 = vmatprep.subr.mxu0 0.0
    %1588 = vmatpush1.msra.mxu0 0.0
    %1589 = vmatprep.subr.mxu0 0.0
    %1590 = vmatpush1.msra.mxu0 0.0
    %1591 = vmatprep.subr.mxu0 0.0
    %1592 = vmatpush1.msra.mxu0 0.0
    %1593 = vmatprep.subr.mxu0 0.0
    %1594 = vmatpush1.msra.mxu0 0.0
    %1595 = vmatprep.subr.mxu0 0.0
    %1596 = vmatpush1.msra.mxu0 0.0
    %1597 = vmatprep.subr.mxu0 0.0
    %1598 = vmatpush1.msra.mxu0 0.0
    %1599 = vmatprep.subr.mxu0 0.0
    %1600 = vmatpush1.msra.mxu0 0.0
    %1601 = vmatprep.subr.mxu0 0.0
    %1602 = vmatpush1.msra.mxu0 0.0
    %1603 = vmatprep.subr.mxu0 0.0
    %1604 = vmatpush1.msra.mxu0 0.0
    %1605 = vmatprep.subr.mxu0 0.0
    %1606 = vmatpush1.msra.mxu0 0.0
    %1607 = vmatprep.subr.mxu0 0.0
    %1608 = vmatpush1.msra.mxu0 0.0
    %1609 = vmatprep.mubr.f32.mxu0 0.0
    %1610 = vmatmul.mubr.f32.gmra.mrb[0].mxu0 %v1543
    %v1611 = vpop.f32.mrb[0].mxu0
    %v1612 = vadd.f32 %v1541, %v1611
    %v1613 = vpop.f32.mrb[0].mxu0
    %1614 = vdwg.mxu0
    %vm1615 = vcmask 1024
    %1616 = vst.msk [vmem:[%s9] sm:$0x3] %vm1615, %v1612
    // Predicated region
    $region38: #{_lambda_.1} parent=1 // pred_check
      _
    $region39: #{_lambda_.1} parent=1 // pred_check_branch
      %1618 = sbr.rel (0) target = $region41
    $region40: #{_lambda_.1} parent=1 // pred_region
      _
    $region41: #{_lambda_.1} parent=1 // pred_fallthru
      _
    // Predicated region
    $region42: #{_lambda_.1} parent=1 // pred_check
      _
    $region43: #{_lambda_.1} parent=1 // pred_check_branch
      %1620 = sbr.rel (0) target = $region45
    $region44: #{_lambda_.1} parent=1 // pred_region
      %s1622 = ssub.s32 32, 32
      %1623 = vsyncadd [#allocation3], %s1622
      %s1625 = sshll.u32 [#allocation2], 4
      %s1626 = int_to_ptr.vmem [resolvable:$true] %s1625
      %1628 = dma.vmem_to_hbm [thread:$0]  %s1626, 32, %s10, [#allocation3]
    $region45: #{_lambda_.1} parent=1 // pred_fallthru
      _
    // Predicated region
    $region46: #{_lambda_.1} parent=1 // pred_check
      _
    $region47: #{_lambda_.1} parent=1 // pred_check_branch
      %1630 = sbr.rel (0) target = $region49
    $region48: #{_lambda_.1} parent=1 // pred_region
      _
    $region49: #{_lambda_.1} parent=1 // pred_fallthru
      _
    // Predicated region
    $region50: #{_lambda_.1} parent=1 // pred_check
      _
    $region51: #{_lambda_.1} parent=1 // pred_check_branch
      %1632 = sbr.rel (0) target = $region53
    $region52: #{_lambda_.1} parent=1 // pred_region
      %1633 = dma.done [#allocation3], 32
    $region53: #{_lambda_.1} parent=1 // pred_fallthru
      _
    %1634 = vsyncpa [#allocation3], 1

</llo_original>
